<compile_context>
chip_gen: v5e
topology: v5e:2x2
jax: 0.10.0
libtpu: 0.0.40
codegen_flags: <defaults>
</compile_context>

<pallas_src>
import jax
import jax.numpy as jnp
from jax.experimental import pallas as pl
from jax.experimental.pallas import tpu as pltpu


def conv1x1_silu_kernel(x_ref, w_ref, b_ref, o_ref):
    """One spatial tile of fused 1x1 conv + SiLU.

    x_ref : VMEM (1, C_in,  R, 128)  -- dense (R,128) block per input channel
    w_ref : SMEM (C_out, C_in)       -- scalar weights
    b_ref : SMEM (C_out,)            -- scalar bias
    o_ref : VMEM (1, C_out, R, 128)  -- dense (R,128) block per output channel
    """
    c_out, c_in = w_ref.shape
    for o in range(c_out):
        # Re-slice x per (o, k): live vregs stay ~2 blocks (acc + xk) -> no
        # spills; every slice is a dense, full-sublane (R, 128) value.
        acc = b_ref[o] + w_ref[o, 0] * x_ref[0, 0].astype(jnp.float32)
        for k in range(1, c_in):
            acc = acc + w_ref[o, k] * x_ref[0, k].astype(jnp.float32)
        # SiLU: sigmoid goes to the EUP slot, the multiply to the VALU.
        o_ref[0, o] = (acc * jax.nn.sigmoid(acc)).astype(o_ref.dtype)


def _tensorcores_per_chip():
    # Heuristic: v7x (and v4 megacore) expose 2 TensorCores per device;
    # v5e / v6e have one.  Falls back to 1 if the query fails.
    try:
        kind = jax.devices()[0].device_kind.lower()
    except Exception:
        return 1
    return 2 if ("v7" in kind or "v4" in kind) else 1


def conv1x1_silu(x_nchw, weight, bias, *, max_block_rows=128):
    """PyTorch-equivalent Conv2d(C_in, C_out, kernel_size=1) followed by SiLU.

    x_nchw: (N, C_in, H, W); weight: (C_out, C_in); bias: (C_out,)
    """
    N, C_in, H, W = x_nchw.shape
    C_out = weight.shape[0]
    M = H * W
    LANES = 128

    # NCHW already has spatial last; splitting it into (rows, 128) is a pure
    # metadata reshape (contiguous), no HBM transpose / extra pass.
    m_pad = pl.cdiv(M, LANES) * LANES
    x_rows = x_nchw.reshape(N, C_in, M)
    if m_pad != M:  # only if H*W is not a multiple of 128
        x_rows = jnp.pad(x_rows, ((0, 0), (0, 0), (0, m_pad - M)))
    rows = m_pad // LANES
    x_blk = x_rows.reshape(N, C_in, rows, LANES)

    # Tile the row axis: one tile per TensorCore (v5e/v6e -> 1, v7x -> 2),
    # capped so acc + x-slice values stay well inside the 64-vreg file.
    n_tc = _tensorcores_per_chip()
    if rows <= 8:
        block_rows = rows                              # full dim: always legal
    else:
        block_rows = min(pl.cdiv(rows, n_tc), max_block_rows)
        block_rows = ((block_rows + 7) // 8) * 8       # sublane multiple
        block_rows = min(block_rows, rows)             # or full dim
    m_tiles = pl.cdiv(rows, block_rows)

    w = weight.astype(jnp.float32)   # (C_out, C_in) -> SMEM scalars
    b = bias.astype(jnp.float32)     # (C_out,)      -> SMEM scalars

    out_blk = pl.pallas_call(
        conv1x1_silu_kernel,
        out_shape=jax.ShapeDtypeStruct((N, C_out, rows, LANES), x_nchw.dtype),
        grid_spec=pltpu.PrefetchScalarGridSpec(
            num_scalar_prefetch=0,
            grid=(N, m_tiles),
            in_specs=[
                pl.BlockSpec((1, C_in, block_rows, LANES),
                             lambda n, j: (n, 0, j, 0)),
                pl.BlockSpec(memory_space=pltpu.MemorySpace.SMEM),   # weight
                pl.BlockSpec(memory_space=pltpu.MemorySpace.SMEM),   # bias
            ],
            out_specs=pl.BlockSpec((1, C_out, block_rows, LANES),
                                   lambda n, j: (n, 0, j, 0)),
        ),
        compiler_params=pltpu.CompilerParams(
            dimension_semantics=("parallel", "parallel"),
        ),
    )(x_blk, w, b)

    out = out_blk.reshape(N, C_out, m_pad)
    if m_pad != M:
        out = out[:, :, :M]
    return out.reshape(N, C_out, H, W)


if __name__ == "__main__":
    key = jax.random.PRNGKey(0)
    k_x, k_w, k_b = jax.random.split(key, 3)

    # Shapes implied by the module: Conv2d(5, 8, 1) on (1, 5, 64, 64)
    N, C_in, H, W = 1, 5, 64, 64
    C_out = 8

    x = jax.random.normal(k_x, (N, C_in, H, W), dtype=jnp.float32)

    # Deterministic Conv2d-style init: U(-k, k), k = 1/sqrt(fan_in), fan_in = C_in
    bound = 1.0 / (C_in ** 0.5)
    weight = jax.random.uniform(k_w, (C_out, C_in), minval=-bound, maxval=bound,
                                dtype=jnp.float32)
    bias = jax.random.uniform(k_b, (C_out,), minval=-bound, maxval=bound,
                              dtype=jnp.float32)

    out = jax.block_until_ready(conv1x1_silu(x, weight, bias))

    # Lightweight correctness check against a plain-JAX reference
    ref_pre = jnp.einsum('nchw,oc->nohw', x, weight) + bias[None, :, None, None]
    ref = ref_pre * jax.nn.sigmoid(ref_pre)
    assert out.shape == (N, C_out, H, W)
    assert jnp.allclose(out, ref, atol=1e-5, rtol=1e-5)

    print("KERNEL_OK")
</pallas_src>

<mosaic_0001>
module attributes {stable_mosaic.version = 11 : i64} {
  func.func @conv1x1_silu_kernel(%arg0: i32, %arg1: i32, %arg2: memref<1x5x32x128xf32, #tpu.memory_space<vmem>>, %arg3: memref<8x5xf32, #tpu.memory_space<smem>>, %arg4: memref<8xf32, #tpu.memory_space<smem>>, %arg5: memref<1x8x32x128xf32, #tpu.memory_space<vmem>>) attributes {dimension_semantics = [#tpu.dimension_semantics<parallel>, #tpu.dimension_semantics<parallel>], iteration_bounds = array<i64: 1, 1>, scalar_prefetch = 0 : i64, scratch_operands = 0 : i64, tpu.core_type = #tpu.core_type<tc>, window_params = [{transform_indices = @transform_0, window_bounds = array<i64: 1, 5, 32, 128>}, {transform_indices = @transform_1, window_bounds = array<i64: 8, 5>}, {transform_indices = @transform_2, window_bounds = array<i64: 8>}, {transform_indices = @transform_3, window_bounds = array<i64: 1, 8, 32, 128>}]} {
    %c0 = arith.constant 0 : index
    %0 = memref.load %arg4[%c0] : memref<8xf32, #tpu.memory_space<smem>>
    %c0_0 = arith.constant 0 : index
    %c0_1 = arith.constant 0 : index
    %1 = memref.load %arg3[%c0_0, %c0_1] : memref<8x5xf32, #tpu.memory_space<smem>>
    %c0_2 = arith.constant 0 : index
    %c0_3 = arith.constant 0 : index
    %c0_4 = arith.constant 0 : index
    %c0_5 = arith.constant 0 : index
    %2 = vector.load %arg2[%c0_2, %c0_3, %c0_4, %c0_5] : memref<1x5x32x128xf32, #tpu.memory_space<vmem>>, vector<1x1x32x128xf32>
    %3 = vector.shape_cast %2 : vector<1x1x32x128xf32> to vector<32x128xf32>
    %4 = vector.broadcast %1 : f32 to vector<32x128xf32>
    %5 = arith.mulf %4, %3 : vector<32x128xf32>
    %6 = vector.broadcast %0 : f32 to vector<32x128xf32>
    %7 = arith.addf %6, %5 : vector<32x128xf32>
    %c0_6 = arith.constant 0 : index
    %c1 = arith.constant 1 : index
    %8 = memref.load %arg3[%c0_6, %c1] : memref<8x5xf32, #tpu.memory_space<smem>>
    %c0_7 = arith.constant 0 : index
    %c1_8 = arith.constant 1 : index
    %c0_9 = arith.constant 0 : index
    %c0_10 = arith.constant 0 : index
    %9 = vector.load %arg2[%c0_7, %c1_8, %c0_9, %c0_10] : memref<1x5x32x128xf32, #tpu.memory_space<vmem>>, vector<1x1x32x128xf32>
    %10 = vector.shape_cast %9 : vector<1x1x32x128xf32> to vector<32x128xf32>
    %11 = vector.broadcast %8 : f32 to vector<32x128xf32>
    %12 = arith.mulf %11, %10 : vector<32x128xf32>
    %13 = arith.addf %7, %12 : vector<32x128xf32>
    %c0_11 = arith.constant 0 : index
    %c2 = arith.constant 2 : index
    %14 = memref.load %arg3[%c0_11, %c2] : memref<8x5xf32, #tpu.memory_space<smem>>
    %c0_12 = arith.constant 0 : index
    %c2_13 = arith.constant 2 : index
    %c0_14 = arith.constant 0 : index
    %c0_15 = arith.constant 0 : index
    %15 = vector.load %arg2[%c0_12, %c2_13, %c0_14, %c0_15] : memref<1x5x32x128xf32, #tpu.memory_space<vmem>>, vector<1x1x32x128xf32>
    %16 = vector.shape_cast %15 : vector<1x1x32x128xf32> to vector<32x128xf32>
    %17 = vector.broadcast %14 : f32 to vector<32x128xf32>
    %18 = arith.mulf %17, %16 : vector<32x128xf32>
    %19 = arith.addf %13, %18 : vector<32x128xf32>
    %c0_16 = arith.constant 0 : index
    %c3 = arith.constant 3 : index
    %20 = memref.load %arg3[%c0_16, %c3] : memref<8x5xf32, #tpu.memory_space<smem>>
    %c0_17 = arith.constant 0 : index
    %c3_18 = arith.constant 3 : index
    %c0_19 = arith.constant 0 : index
    %c0_20 = arith.constant 0 : index
    %21 = vector.load %arg2[%c0_17, %c3_18, %c0_19, %c0_20] : memref<1x5x32x128xf32, #tpu.memory_space<vmem>>, vector<1x1x32x128xf32>
    %22 = vector.shape_cast %21 : vector<1x1x32x128xf32> to vector<32x128xf32>
    %23 = vector.broadcast %20 : f32 to vector<32x128xf32>
    %24 = arith.mulf %23, %22 : vector<32x128xf32>
    %25 = arith.addf %19, %24 : vector<32x128xf32>
    %c0_21 = arith.constant 0 : index
    %c4 = arith.constant 4 : index
    %26 = memref.load %arg3[%c0_21, %c4] : memref<8x5xf32, #tpu.memory_space<smem>>
    %c0_22 = arith.constant 0 : index
    %c4_23 = arith.constant 4 : index
    %c0_24 = arith.constant 0 : index
    %c0_25 = arith.constant 0 : index
    %27 = vector.load %arg2[%c0_22, %c4_23, %c0_24, %c0_25] : memref<1x5x32x128xf32, #tpu.memory_space<vmem>>, vector<1x1x32x128xf32>
    %28 = vector.shape_cast %27 : vector<1x1x32x128xf32> to vector<32x128xf32>
    %29 = vector.broadcast %26 : f32 to vector<32x128xf32>
    %30 = arith.mulf %29, %28 : vector<32x128xf32>
    %31 = arith.addf %25, %30 : vector<32x128xf32>
    %32 = arith.negf %31 : vector<32x128xf32>
    %33 = math.exp %32 : vector<32x128xf32>
    %cst = arith.constant 1.000000e+00 : f32
    %34 = vector.broadcast %cst : f32 to vector<32x128xf32>
    %35 = arith.addf %34, %33 : vector<32x128xf32>
    %36 = arith.divf %34, %35 : vector<32x128xf32>
    %37 = arith.mulf %31, %36 : vector<32x128xf32>
    %c0_26 = arith.constant 0 : index
    %c0_27 = arith.constant 0 : index
    %c0_28 = arith.constant 0 : index
    %c0_29 = arith.constant 0 : index
    %38 = vector.load %arg5[%c0_26, %c0_27, %c0_28, %c0_29] : memref<1x8x32x128xf32, #tpu.memory_space<vmem>>, vector<1x1x32x128xf32>
    %39 = vector.shape_cast %38 : vector<1x1x32x128xf32> to vector<32x128xf32>
    %40 = vector.shape_cast %37 : vector<32x128xf32> to vector<1x1x32x128xf32>
    tpu.vector_store %arg5[%c0_26, %c0_27, %c0_28, %c0_29], %40 {strides = array<i32>} : memref<1x8x32x128xf32, #tpu.memory_space<vmem>>, vector<1x1x32x128xf32>,
    %c1_30 = arith.constant 1 : index
    %41 = memref.load %arg4[%c1_30] : memref<8xf32, #tpu.memory_space<smem>>
    %c1_31 = arith.constant 1 : index
    %c0_32 = arith.constant 0 : index
    %42 = memref.load %arg3[%c1_31, %c0_32] : memref<8x5xf32, #tpu.memory_space<smem>>
    %c0_33 = arith.constant 0 : index
    %c0_34 = arith.constant 0 : index
    %c0_35 = arith.constant 0 : index
    %c0_36 = arith.constant 0 : index
    %43 = vector.load %arg2[%c0_33, %c0_34, %c0_35, %c0_36] : memref<1x5x32x128xf32, #tpu.memory_space<vmem>>, vector<1x1x32x128xf32>
    %44 = vector.shape_cast %43 : vector<1x1x32x128xf32> to vector<32x128xf32>
    %45 = vector.broadcast %42 : f32 to vector<32x128xf32>
    %46 = arith.mulf %45, %44 : vector<32x128xf32>
    %47 = vector.broadcast %41 : f32 to vector<32x128xf32>
    %48 = arith.addf %47, %46 : vector<32x128xf32>
    %c1_37 = arith.constant 1 : index
    %c1_38 = arith.constant 1 : index
    %49 = memref.load %arg3[%c1_37, %c1_38] : memref<8x5xf32, #tpu.memory_space<smem>>
    %c0_39 = arith.constant 0 : index
    %c1_40 = arith.constant 1 : index
    %c0_41 = arith.constant 0 : index
    %c0_42 = arith.constant 0 : index
    %50 = vector.load %arg2[%c0_39, %c1_40, %c0_41, %c0_42] : memref<1x5x32x128xf32, #tpu.memory_space<vmem>>, vector<1x1x32x128xf32>
    %51 = vector.shape_cast %50 : vector<1x1x32x128xf32> to vector<32x128xf32>
    %52 = vector.broadcast %49 : f32 to vector<32x128xf32>
    %53 = arith.mulf %52, %51 : vector<32x128xf32>
    %54 = arith.addf %48, %53 : vector<32x128xf32>
    %c1_43 = arith.constant 1 : index
    %c2_44 = arith.constant 2 : index
    %55 = memref.load %arg3[%c1_43, %c2_44] : memref<8x5xf32, #tpu.memory_space<smem>>
    %c0_45 = arith.constant 0 : index
    %c2_46 = arith.constant 2 : index
    %c0_47 = arith.constant 0 : index
    %c0_48 = arith.constant 0 : index
    %56 = vector.load %arg2[%c0_45, %c2_46, %c0_47, %c0_48] : memref<1x5x32x128xf32, #tpu.memory_space<vmem>>, vector<1x1x32x128xf32>
    %57 = vector.shape_cast %56 : vector<1x1x32x128xf32> to vector<32x128xf32>
    %58 = vector.broadcast %55 : f32 to vector<32x128xf32>
    %59 = arith.mulf %58, %57 : vector<32x128xf32>
    %60 = arith.addf %54, %59 : vector<32x128xf32>
    %c1_49 = arith.constant 1 : index
    %c3_50 = arith.constant 3 : index
    %61 = memref.load %arg3[%c1_49, %c3_50] : memref<8x5xf32, #tpu.memory_space<smem>>
    %c0_51 = arith.constant 0 : index
    %c3_52 = arith.constant 3 : index
    %c0_53 = arith.constant 0 : index
    %c0_54 = arith.constant 0 : index
    %62 = vector.load %arg2[%c0_51, %c3_52, %c0_53, %c0_54] : memref<1x5x32x128xf32, #tpu.memory_space<vmem>>, vector<1x1x32x128xf32>
    %63 = vector.shape_cast %62 : vector<1x1x32x128xf32> to vector<32x128xf32>
    %64 = vector.broadcast %61 : f32 to vector<32x128xf32>
    %65 = arith.mulf %64, %63 : vector<32x128xf32>
    %66 = arith.addf %60, %65 : vector<32x128xf32>
    %c1_55 = arith.constant 1 : index
    %c4_56 = arith.constant 4 : index
    %67 = memref.load %arg3[%c1_55, %c4_56] : memref<8x5xf32, #tpu.memory_space<smem>>
    %c0_57 = arith.constant 0 : index
    %c4_58 = arith.constant 4 : index
    %c0_59 = arith.constant 0 : index
    %c0_60 = arith.constant 0 : index
    %68 = vector.load %arg2[%c0_57, %c4_58, %c0_59, %c0_60] : memref<1x5x32x128xf32, #tpu.memory_space<vmem>>, vector<1x1x32x128xf32>
    %69 = vector.shape_cast %68 : vector<1x1x32x128xf32> to vector<32x128xf32>
    %70 = vector.broadcast %67 : f32 to vector<32x128xf32>
    %71 = arith.mulf %70, %69 : vector<32x128xf32>
    %72 = arith.addf %66, %71 : vector<32x128xf32>
    %73 = arith.negf %72 : vector<32x128xf32>
    %74 = math.exp %73 : vector<32x128xf32>
    %cst_61 = arith.constant 1.000000e+00 : f32
    %75 = vector.broadcast %cst_61 : f32 to vector<32x128xf32>
    %76 = arith.addf %75, %74 : vector<32x128xf32>
    %77 = arith.divf %75, %76 : vector<32x128xf32>
    %78 = arith.mulf %72, %77 : vector<32x128xf32>
    %c0_62 = arith.constant 0 : index
    %c1_63 = arith.constant 1 : index
    %c0_64 = arith.constant 0 : index
    %c0_65 = arith.constant 0 : index
    %79 = vector.load %arg5[%c0_62, %c1_63, %c0_64, %c0_65] : memref<1x8x32x128xf32, #tpu.memory_space<vmem>>, vector<1x1x32x128xf32>
    %80 = vector.shape_cast %79 : vector<1x1x32x128xf32> to vector<32x128xf32>
    %81 = vector.shape_cast %78 : vector<32x128xf32> to vector<1x1x32x128xf32>
    tpu.vector_store %arg5[%c0_62, %c1_63, %c0_64, %c0_65], %81 {strides = array<i32>} : memref<1x8x32x128xf32, #tpu.memory_space<vmem>>, vector<1x1x32x128xf32>,
    %c2_66 = arith.constant 2 : index
    %82 = memref.load %arg4[%c2_66] : memref<8xf32, #tpu.memory_space<smem>>
    %c2_67 = arith.constant 2 : index
    %c0_68 = arith.constant 0 : index
    %83 = memref.load %arg3[%c2_67, %c0_68] : memref<8x5xf32, #tpu.memory_space<smem>>
    %c0_69 = arith.constant 0 : index
    %c0_70 = arith.constant 0 : index
    %c0_71 = arith.constant 0 : index
    %c0_72 = arith.constant 0 : index
    %84 = vector.load %arg2[%c0_69, %c0_70, %c0_71, %c0_72] : memref<1x5x32x128xf32, #tpu.memory_space<vmem>>, vector<1x1x32x128xf32>
    %85 = vector.shape_cast %84 : vector<1x1x32x128xf32> to vector<32x128xf32>
    %86 = vector.broadcast %83 : f32 to vector<32x128xf32>
    %87 = arith.mulf %86, %85 : vector<32x128xf32>
    %88 = vector.broadcast %82 : f32 to vector<32x128xf32>
    %89 = arith.addf %88, %87 : vector<32x128xf32>
    %c2_73 = arith.constant 2 : index
    %c1_74 = arith.constant 1 : index
    %90 = memref.load %arg3[%c2_73, %c1_74] : memref<8x5xf32, #tpu.memory_space<smem>>
    %c0_75 = arith.constant 0 : index
    %c1_76 = arith.constant 1 : index
    %c0_77 = arith.constant 0 : index
    %c0_78 = arith.constant 0 : index
    %91 = vector.load %arg2[%c0_75, %c1_76, %c0_77, %c0_78] : memref<1x5x32x128xf32, #tpu.memory_space<vmem>>, vector<1x1x32x128xf32>
    %92 = vector.shape_cast %91 : vector<1x1x32x128xf32> to vector<32x128xf32>
    %93 = vector.broadcast %90 : f32 to vector<32x128xf32>
    %94 = arith.mulf %93, %92 : vector<32x128xf32>
    %95 = arith.addf %89, %94 : vector<32x128xf32>
    %c2_79 = arith.constant 2 : index
    %c2_80 = arith.constant 2 : index
    %96 = memref.load %arg3[%c2_79, %c2_80] : memref<8x5xf32, #tpu.memory_space<smem>>
    %c0_81 = arith.constant 0 : index
    %c2_82 = arith.constant 2 : index
    %c0_83 = arith.constant 0 : index
    %c0_84 = arith.constant 0 : index
    %97 = vector.load %arg2[%c0_81, %c2_82, %c0_83, %c0_84] : memref<1x5x32x128xf32, #tpu.memory_space<vmem>>, vector<1x1x32x128xf32>
    %98 = vector.shape_cast %97 : vector<1x1x32x128xf32> to vector<32x128xf32>
    %99 = vector.broadcast %96 : f32 to vector<32x128xf32>
    %100 = arith.mulf %99, %98 : vector<32x128xf32>
    %101 = arith.addf %95, %100 : vector<32x128xf32>
    %c2_85 = arith.constant 2 : index
    %c3_86 = arith.constant 3 : index
    %102 = memref.load %arg3[%c2_85, %c3_86] : memref<8x5xf32, #tpu.memory_space<smem>>
    %c0_87 = arith.constant 0 : index
    %c3_88 = arith.constant 3 : index
    %c0_89 = arith.constant 0 : index
    %c0_90 = arith.constant 0 : index
    %103 = vector.load %arg2[%c0_87, %c3_88, %c0_89, %c0_90] : memref<1x5x32x128xf32, #tpu.memory_space<vmem>>, vector<1x1x32x128xf32>
    %104 = vector.shape_cast %103 : vector<1x1x32x128xf32> to vector<32x128xf32>
    %105 = vector.broadcast %102 : f32 to vector<32x128xf32>
    %106 = arith.mulf %105, %104 : vector<32x128xf32>
    %107 = arith.addf %101, %106 : vector<32x128xf32>
    %c2_91 = arith.constant 2 : index
    %c4_92 = arith.constant 4 : index
    %108 = memref.load %arg3[%c2_91, %c4_92] : memref<8x5xf32, #tpu.memory_space<smem>>
    %c0_93 = arith.constant 0 : index
    %c4_94 = arith.constant 4 : index
    %c0_95 = arith.constant 0 : index
    %c0_96 = arith.constant 0 : index
    %109 = vector.load %arg2[%c0_93, %c4_94, %c0_95, %c0_96] : memref<1x5x32x128xf32, #tpu.memory_space<vmem>>, vector<1x1x32x128xf32>
    %110 = vector.shape_cast %109 : vector<1x1x32x128xf32> to vector<32x128xf32>
    %111 = vector.broadcast %108 : f32 to vector<32x128xf32>
    %112 = arith.mulf %111, %110 : vector<32x128xf32>
    %113 = arith.addf %107, %112 : vector<32x128xf32>
    %114 = arith.negf %113 : vector<32x128xf32>
    %115 = math.exp %114 : vector<32x128xf32>
    %cst_97 = arith.constant 1.000000e+00 : f32
    %116 = vector.broadcast %cst_97 : f32 to vector<32x128xf32>
    %117 = arith.addf %116, %115 : vector<32x128xf32>
    %118 = arith.divf %116, %117 : vector<32x128xf32>
    %119 = arith.mulf %113, %118 : vector<32x128xf32>
    %c0_98 = arith.constant 0 : index
    %c2_99 = arith.constant 2 : index
    %c0_100 = arith.constant 0 : index
    %c0_101 = arith.constant 0 : index
    %120 = vector.load %arg5[%c0_98, %c2_99, %c0_100, %c0_101] : memref<1x8x32x128xf32, #tpu.memory_space<vmem>>, vector<1x1x32x128xf32>
    %121 = vector.shape_cast %120 : vector<1x1x32x128xf32> to vector<32x128xf32>
    %122 = vector.shape_cast %119 : vector<32x128xf32> to vector<1x1x32x128xf32>
    tpu.vector_store %arg5[%c0_98, %c2_99, %c0_100, %c0_101], %122 {strides = array<i32>} : memref<1x8x32x128xf32, #tpu.memory_space<vmem>>, vector<1x1x32x128xf32>,
    %c3_102 = arith.constant 3 : index
    %123 = memref.load %arg4[%c3_102] : memref<8xf32, #tpu.memory_space<smem>>
    %c3_103 = arith.constant 3 : index
    %c0_104 = arith.constant 0 : index
    %124 = memref.load %arg3[%c3_103, %c0_104] : memref<8x5xf32, #tpu.memory_space<smem>>
    %c0_105 = arith.constant 0 : index
    %c0_106 = arith.constant 0 : index
    %c0_107 = arith.constant 0 : index
    %c0_108 = arith.constant 0 : index
    %125 = vector.load %arg2[%c0_105, %c0_106, %c0_107, %c0_108] : memref<1x5x32x128xf32, #tpu.memory_space<vmem>>, vector<1x1x32x128xf32>
    %126 = vector.shape_cast %125 : vector<1x1x32x128xf32> to vector<32x128xf32>
    %127 = vector.broadcast %124 : f32 to vector<32x128xf32>
    %128 = arith.mulf %127, %126 : vector<32x128xf32>
    %129 = vector.broadcast %123 : f32 to vector<32x128xf32>
    %130 = arith.addf %129, %128 : vector<32x128xf32>
    %c3_109 = arith.constant 3 : index
    %c1_110 = arith.constant 1 : index
    %131 = memref.load %arg3[%c3_109, %c1_110] : memref<8x5xf32, #tpu.memory_space<smem>>
    %c0_111 = arith.constant 0 : index
    %c1_112 = arith.constant 1 : index
    %c0_113 = arith.constant 0 : index
    %c0_114 = arith.constant 0 : index
    %132 = vector.load %arg2[%c0_111, %c1_112, %c0_113, %c0_114] : memref<1x5x32x128xf32, #tpu.memory_space<vmem>>, vector<1x1x32x128xf32>
    %133 = vector.shape_cast %132 : vector<1x1x32x128xf32> to vector<32x128xf32>
    %134 = vector.broadcast %131 : f32 to vector<32x128xf32>
    %135 = arith.mulf %134, %133 : vector<32x128xf32>
    %136 = arith.addf %130, %135 : vector<32x128xf32>
    %c3_115 = arith.constant 3 : index
    %c2_116 = arith.constant 2 : index
    %137 = memref.load %arg3[%c3_115, %c2_116] : memref<8x5xf32, #tpu.memory_space<smem>>
    %c0_117 = arith.constant 0 : index
    %c2_118 = arith.constant 2 : index
    %c0_119 = arith.constant 0 : index
    %c0_120 = arith.constant 0 : index
    %138 = vector.load %arg2[%c0_117, %c2_118, %c0_119, %c0_120] : memref<1x5x32x128xf32, #tpu.memory_space<vmem>>, vector<1x1x32x128xf32>
    %139 = vector.shape_cast %138 : vector<1x1x32x128xf32> to vector<32x128xf32>
    %140 = vector.broadcast %137 : f32 to vector<32x128xf32>
    %141 = arith.mulf %140, %139 : vector<32x128xf32>
    %142 = arith.addf %136, %141 : vector<32x128xf32>
    %c3_121 = arith.constant 3 : index
    %c3_122 = arith.constant 3 : index
    %143 = memref.load %arg3[%c3_121, %c3_122] : memref<8x5xf32, #tpu.memory_space<smem>>
    %c0_123 = arith.constant 0 : index
    %c3_124 = arith.constant 3 : index
    %c0_125 = arith.constant 0 : index
    %c0_126 = arith.constant 0 : index
    %144 = vector.load %arg2[%c0_123, %c3_124, %c0_125, %c0_126] : memref<1x5x32x128xf32, #tpu.memory_space<vmem>>, vector<1x1x32x128xf32>
    %145 = vector.shape_cast %144 : vector<1x1x32x128xf32> to vector<32x128xf32>
    %146 = vector.broadcast %143 : f32 to vector<32x128xf32>
    %147 = arith.mulf %146, %145 : vector<32x128xf32>
    %148 = arith.addf %142, %147 : vector<32x128xf32>
    %c3_127 = arith.constant 3 : index
    %c4_128 = arith.constant 4 : index
    %149 = memref.load %arg3[%c3_127, %c4_128] : memref<8x5xf32, #tpu.memory_space<smem>>
    %c0_129 = arith.constant 0 : index
    %c4_130 = arith.constant 4 : index
    %c0_131 = arith.constant 0 : index
    %c0_132 = arith.constant 0 : index
    %150 = vector.load %arg2[%c0_129, %c4_130, %c0_131, %c0_132] : memref<1x5x32x128xf32, #tpu.memory_space<vmem>>, vector<1x1x32x128xf32>
    %151 = vector.shape_cast %150 : vector<1x1x32x128xf32> to vector<32x128xf32>
    %152 = vector.broadcast %149 : f32 to vector<32x128xf32>
    %153 = arith.mulf %152, %151 : vector<32x128xf32>
    %154 = arith.addf %148, %153 : vector<32x128xf32>
    %155 = arith.negf %154 : vector<32x128xf32>
    %156 = math.exp %155 : vector<32x128xf32>
    %cst_133 = arith.constant 1.000000e+00 : f32
    %157 = vector.broadcast %cst_133 : f32 to vector<32x128xf32>
    %158 = arith.addf %157, %156 : vector<32x128xf32>
    %159 = arith.divf %157, %158 : vector<32x128xf32>
    %160 = arith.mulf %154, %159 : vector<32x128xf32>
    %c0_134 = arith.constant 0 : index
    %c3_135 = arith.constant 3 : index
    %c0_136 = arith.constant 0 : index
    %c0_137 = arith.constant 0 : index
    %161 = vector.load %arg5[%c0_134, %c3_135, %c0_136, %c0_137] : memref<1x8x32x128xf32, #tpu.memory_space<vmem>>, vector<1x1x32x128xf32>
    %162 = vector.shape_cast %161 : vector<1x1x32x128xf32> to vector<32x128xf32>
    %163 = vector.shape_cast %160 : vector<32x128xf32> to vector<1x1x32x128xf32>
    tpu.vector_store %arg5[%c0_134, %c3_135, %c0_136, %c0_137], %163 {strides = array<i32>} : memref<1x8x32x128xf32, #tpu.memory_space<vmem>>, vector<1x1x32x128xf32>,
    %c4_138 = arith.constant 4 : index
    %164 = memref.load %arg4[%c4_138] : memref<8xf32, #tpu.memory_space<smem>>
    %c4_139 = arith.constant 4 : index
    %c0_140 = arith.constant 0 : index
    %165 = memref.load %arg3[%c4_139, %c0_140] : memref<8x5xf32, #tpu.memory_space<smem>>
    %c0_141 = arith.constant 0 : index
    %c0_142 = arith.constant 0 : index
    %c0_143 = arith.constant 0 : index
    %c0_144 = arith.constant 0 : index
    %166 = vector.load %arg2[%c0_141, %c0_142, %c0_143, %c0_144] : memref<1x5x32x128xf32, #tpu.memory_space<vmem>>, vector<1x1x32x128xf32>
    %167 = vector.shape_cast %166 : vector<1x1x32x128xf32> to vector<32x128xf32>
    %168 = vector.broadcast %165 : f32 to vector<32x128xf32>
    %169 = arith.mulf %168, %167 : vector<32x128xf32>
    %170 = vector.broadcast %164 : f32 to vector<32x128xf32>
    %171 = arith.addf %170, %169 : vector<32x128xf32>
    %c4_145 = arith.constant 4 : index
    %c1_146 = arith.constant 1 : index
    %172 = memref.load %arg3[%c4_145, %c1_146] : memref<8x5xf32, #tpu.memory_space<smem>>
    %c0_147 = arith.constant 0 : index
    %c1_148 = arith.constant 1 : index
    %c0_149 = arith.constant 0 : index
    %c0_150 = arith.constant 0 : index
    %173 = vector.load %arg2[%c0_147, %c1_148, %c0_149, %c0_150] : memref<1x5x32x128xf32, #tpu.memory_space<vmem>>, vector<1x1x32x128xf32>
    %174 = vector.shape_cast %173 : vector<1x1x32x128xf32> to vector<32x128xf32>
    %175 = vector.broadcast %172 : f32 to vector<32x128xf32>
    %176 = arith.mulf %175, %174 : vector<32x128xf32>
    %177 = arith.addf %171, %176 : vector<32x128xf32>
    %c4_151 = arith.constant 4 : index
    %c2_152 = arith.constant 2 : index
    %178 = memref.load %arg3[%c4_151, %c2_152] : memref<8x5xf32, #tpu.memory_space<smem>>
    %c0_153 = arith.constant 0 : index
    %c2_154 = arith.constant 2 : index
    %c0_155 = arith.constant 0 : index
    %c0_156 = arith.constant 0 : index
    %179 = vector.load %arg2[%c0_153, %c2_154, %c0_155, %c0_156] : memref<1x5x32x128xf32, #tpu.memory_space<vmem>>, vector<1x1x32x128xf32>
    %180 = vector.shape_cast %179 : vector<1x1x32x128xf32> to vector<32x128xf32>
    %181 = vector.broadcast %178 : f32 to vector<32x128xf32>
    %182 = arith.mulf %181, %180 : vector<32x128xf32>
    %183 = arith.addf %177, %182 : vector<32x128xf32>
    %c4_157 = arith.constant 4 : index
    %c3_158 = arith.constant 3 : index
    %184 = memref.load %arg3[%c4_157, %c3_158] : memref<8x5xf32, #tpu.memory_space<smem>>
    %c0_159 = arith.constant 0 : index
    %c3_160 = arith.constant 3 : index
    %c0_161 = arith.constant 0 : index
    %c0_162 = arith.constant 0 : index
    %185 = vector.load %arg2[%c0_159, %c3_160, %c0_161, %c0_162] : memref<1x5x32x128xf32, #tpu.memory_space<vmem>>, vector<1x1x32x128xf32>
    %186 = vector.shape_cast %185 : vector<1x1x32x128xf32> to vector<32x128xf32>
    %187 = vector.broadcast %184 : f32 to vector<32x128xf32>
    %188 = arith.mulf %187, %186 : vector<32x128xf32>
    %189 = arith.addf %183, %188 : vector<32x128xf32>
    %c4_163 = arith.constant 4 : index
    %c4_164 = arith.constant 4 : index
    %190 = memref.load %arg3[%c4_163, %c4_164] : memref<8x5xf32, #tpu.memory_space<smem>>
    %c0_165 = arith.constant 0 : index
    %c4_166 = arith.constant 4 : index
    %c0_167 = arith.constant 0 : index
    %c0_168 = arith.constant 0 : index
    %191 = vector.load %arg2[%c0_165, %c4_166, %c0_167, %c0_168] : memref<1x5x32x128xf32, #tpu.memory_space<vmem>>, vector<1x1x32x128xf32>
    %192 = vector.shape_cast %191 : vector<1x1x32x128xf32> to vector<32x128xf32>
    %193 = vector.broadcast %190 : f32 to vector<32x128xf32>
    %194 = arith.mulf %193, %192 : vector<32x128xf32>
    %195 = arith.addf %189, %194 : vector<32x128xf32>
    %196 = arith.negf %195 : vector<32x128xf32>
    %197 = math.exp %196 : vector<32x128xf32>
    %cst_169 = arith.constant 1.000000e+00 : f32
    %198 = vector.broadcast %cst_169 : f32 to vector<32x128xf32>
    %199 = arith.addf %198, %197 : vector<32x128xf32>
    %200 = arith.divf %198, %199 : vector<32x128xf32>
    %201 = arith.mulf %195, %200 : vector<32x128xf32>
    %c0_170 = arith.constant 0 : index
    %c4_171 = arith.constant 4 : index
    %c0_172 = arith.constant 0 : index
    %c0_173 = arith.constant 0 : index
    %202 = vector.load %arg5[%c0_170, %c4_171, %c0_172, %c0_173] : memref<1x8x32x128xf32, #tpu.memory_space<vmem>>, vector<1x1x32x128xf32>
    %203 = vector.shape_cast %202 : vector<1x1x32x128xf32> to vector<32x128xf32>
    %204 = vector.shape_cast %201 : vector<32x128xf32> to vector<1x1x32x128xf32>
    tpu.vector_store %arg5[%c0_170, %c4_171, %c0_172, %c0_173], %204 {strides = array<i32>} : memref<1x8x32x128xf32, #tpu.memory_space<vmem>>, vector<1x1x32x128xf32>,
    %c5 = arith.constant 5 : index
    %205 = memref.load %arg4[%c5] : memref<8xf32, #tpu.memory_space<smem>>
    %c5_174 = arith.constant 5 : index
    %c0_175 = arith.constant 0 : index
    %206 = memref.load %arg3[%c5_174, %c0_175] : memref<8x5xf32, #tpu.memory_space<smem>>
    %c0_176 = arith.constant 0 : index
    %c0_177 = arith.constant 0 : index
    %c0_178 = arith.constant 0 : index
    %c0_179 = arith.constant 0 : index
    %207 = vector.load %arg2[%c0_176, %c0_177, %c0_178, %c0_179] : memref<1x5x32x128xf32, #tpu.memory_space<vmem>>, vector<1x1x32x128xf32>
    %208 = vector.shape_cast %207 : vector<1x1x32x128xf32> to vector<32x128xf32>
    %209 = vector.broadcast %206 : f32 to vector<32x128xf32>
    %210 = arith.mulf %209, %208 : vector<32x128xf32>
    %211 = vector.broadcast %205 : f32 to vector<32x128xf32>
    %212 = arith.addf %211, %210 : vector<32x128xf32>
    %c5_180 = arith.constant 5 : index
    %c1_181 = arith.constant 1 : index
    %213 = memref.load %arg3[%c5_180, %c1_181] : memref<8x5xf32, #tpu.memory_space<smem>>
    %c0_182 = arith.constant 0 : index
    %c1_183 = arith.constant 1 : index
    %c0_184 = arith.constant 0 : index
    %c0_185 = arith.constant 0 : index
    %214 = vector.load %arg2[%c0_182, %c1_183, %c0_184, %c0_185] : memref<1x5x32x128xf32, #tpu.memory_space<vmem>>, vector<1x1x32x128xf32>
    %215 = vector.shape_cast %214 : vector<1x1x32x128xf32> to vector<32x128xf32>
    %216 = vector.broadcast %213 : f32 to vector<32x128xf32>
    %217 = arith.mulf %216, %215 : vector<32x128xf32>
    %218 = arith.addf %212, %217 : vector<32x128xf32>
    %c5_186 = arith.constant 5 : index
    %c2_187 = arith.constant 2 : index
    %219 = memref.load %arg3[%c5_186, %c2_187] : memref<8x5xf32, #tpu.memory_space<smem>>
    %c0_188 = arith.constant 0 : index
    %c2_189 = arith.constant 2 : index
    %c0_190 = arith.constant 0 : index
    %c0_191 = arith.constant 0 : index
    %220 = vector.load %arg2[%c0_188, %c2_189, %c0_190, %c0_191] : memref<1x5x32x128xf32, #tpu.memory_space<vmem>>, vector<1x1x32x128xf32>
    %221 = vector.shape_cast %220 : vector<1x1x32x128xf32> to vector<32x128xf32>
    %222 = vector.broadcast %219 : f32 to vector<32x128xf32>
    %223 = arith.mulf %222, %221 : vector<32x128xf32>
    %224 = arith.addf %218, %223 : vector<32x128xf32>
    %c5_192 = arith.constant 5 : index
    %c3_193 = arith.constant 3 : index
    %225 = memref.load %arg3[%c5_192, %c3_193] : memref<8x5xf32, #tpu.memory_space<smem>>
    %c0_194 = arith.constant 0 : index
    %c3_195 = arith.constant 3 : index
    %c0_196 = arith.constant 0 : index
    %c0_197 = arith.constant 0 : index
    %226 = vector.load %arg2[%c0_194, %c3_195, %c0_196, %c0_197] : memref<1x5x32x128xf32, #tpu.memory_space<vmem>>, vector<1x1x32x128xf32>
    %227 = vector.shape_cast %226 : vector<1x1x32x128xf32> to vector<32x128xf32>
    %228 = vector.broadcast %225 : f32 to vector<32x128xf32>
    %229 = arith.mulf %228, %227 : vector<32x128xf32>
    %230 = arith.addf %224, %229 : vector<32x128xf32>
    %c5_198 = arith.constant 5 : index
    %c4_199 = arith.constant 4 : index
    %231 = memref.load %arg3[%c5_198, %c4_199] : memref<8x5xf32, #tpu.memory_space<smem>>
    %c0_200 = arith.constant 0 : index
    %c4_201 = arith.constant 4 : index
    %c0_202 = arith.constant 0 : index
    %c0_203 = arith.constant 0 : index
    %232 = vector.load %arg2[%c0_200, %c4_201, %c0_202, %c0_203] : memref<1x5x32x128xf32, #tpu.memory_space<vmem>>, vector<1x1x32x128xf32>
    %233 = vector.shape_cast %232 : vector<1x1x32x128xf32> to vector<32x128xf32>
    %234 = vector.broadcast %231 : f32 to vector<32x128xf32>
    %235 = arith.mulf %234, %233 : vector<32x128xf32>
    %236 = arith.addf %230, %235 : vector<32x128xf32>
    %237 = arith.negf %236 : vector<32x128xf32>
    %238 = math.exp %237 : vector<32x128xf32>
    %cst_204 = arith.constant 1.000000e+00 : f32
    %239 = vector.broadcast %cst_204 : f32 to vector<32x128xf32>
    %240 = arith.addf %239, %238 : vector<32x128xf32>
    %241 = arith.divf %239, %240 : vector<32x128xf32>
    %242 = arith.mulf %236, %241 : vector<32x128xf32>
    %c0_205 = arith.constant 0 : index
    %c5_206 = arith.constant 5 : index
    %c0_207 = arith.constant 0 : index
    %c0_208 = arith.constant 0 : index
    %243 = vector.load %arg5[%c0_205, %c5_206, %c0_207, %c0_208] : memref<1x8x32x128xf32, #tpu.memory_space<vmem>>, vector<1x1x32x128xf32>
    %244 = vector.shape_cast %243 : vector<1x1x32x128xf32> to vector<32x128xf32>
    %245 = vector.shape_cast %242 : vector<32x128xf32> to vector<1x1x32x128xf32>
    tpu.vector_store %arg5[%c0_205, %c5_206, %c0_207, %c0_208], %245 {strides = array<i32>} : memref<1x8x32x128xf32, #tpu.memory_space<vmem>>, vector<1x1x32x128xf32>,
    %c6 = arith.constant 6 : index
    %246 = memref.load %arg4[%c6] : memref<8xf32, #tpu.memory_space<smem>>
    %c6_209 = arith.constant 6 : index
    %c0_210 = arith.constant 0 : index
    %247 = memref.load %arg3[%c6_209, %c0_210] : memref<8x5xf32, #tpu.memory_space<smem>>
    %c0_211 = arith.constant 0 : index
    %c0_212 = arith.constant 0 : index
    %c0_213 = arith.constant 0 : index
    %c0_214 = arith.constant 0 : index
    %248 = vector.load %arg2[%c0_211, %c0_212, %c0_213, %c0_214] : memref<1x5x32x128xf32, #tpu.memory_space<vmem>>, vector<1x1x32x128xf32>
    %249 = vector.shape_cast %248 : vector<1x1x32x128xf32> to vector<32x128xf32>
    %250 = vector.broadcast %247 : f32 to vector<32x128xf32>
    %251 = arith.mulf %250, %249 : vector<32x128xf32>
    %252 = vector.broadcast %246 : f32 to vector<32x128xf32>
    %253 = arith.addf %252, %251 : vector<32x128xf32>
    %c6_215 = arith.constant 6 : index
    %c1_216 = arith.constant 1 : index
    %254 = memref.load %arg3[%c6_215, %c1_216] : memref<8x5xf32, #tpu.memory_space<smem>>
    %c0_217 = arith.constant 0 : index
    %c1_218 = arith.constant 1 : index
    %c0_219 = arith.constant 0 : index
    %c0_220 = arith.constant 0 : index
    %255 = vector.load %arg2[%c0_217, %c1_218, %c0_219, %c0_220] : memref<1x5x32x128xf32, #tpu.memory_space<vmem>>, vector<1x1x32x128xf32>
    %256 = vector.shape_cast %255 : vector<1x1x32x128xf32> to vector<32x128xf32>
    %257 = vector.broadcast %254 : f32 to vector<32x128xf32>
    %258 = arith.mulf %257, %256 : vector<32x128xf32>
    %259 = arith.addf %253, %258 : vector<32x128xf32>
    %c6_221 = arith.constant 6 : index
    %c2_222 = arith.constant 2 : index
    %260 = memref.load %arg3[%c6_221, %c2_222] : memref<8x5xf32, #tpu.memory_space<smem>>
    %c0_223 = arith.constant 0 : index
    %c2_224 = arith.constant 2 : index
    %c0_225 = arith.constant 0 : index
    %c0_226 = arith.constant 0 : index
    %261 = vector.load %arg2[%c0_223, %c2_224, %c0_225, %c0_226] : memref<1x5x32x128xf32, #tpu.memory_space<vmem>>, vector<1x1x32x128xf32>
    %262 = vector.shape_cast %261 : vector<1x1x32x128xf32> to vector<32x128xf32>
    %263 = vector.broadcast %260 : f32 to vector<32x128xf32>
    %264 = arith.mulf %263, %262 : vector<32x128xf32>
    %265 = arith.addf %259, %264 : vector<32x128xf32>
    %c6_227 = arith.constant 6 : index
    %c3_228 = arith.constant 3 : index
    %266 = memref.load %arg3[%c6_227, %c3_228] : memref<8x5xf32, #tpu.memory_space<smem>>
    %c0_229 = arith.constant 0 : index
    %c3_230 = arith.constant 3 : index
    %c0_231 = arith.constant 0 : index
    %c0_232 = arith.constant 0 : index
    %267 = vector.load %arg2[%c0_229, %c3_230, %c0_231, %c0_232] : memref<1x5x32x128xf32, #tpu.memory_space<vmem>>, vector<1x1x32x128xf32>
    %268 = vector.shape_cast %267 : vector<1x1x32x128xf32> to vector<32x128xf32>
    %269 = vector.broadcast %266 : f32 to vector<32x128xf32>
    %270 = arith.mulf %269, %268 : vector<32x128xf32>
    %271 = arith.addf %265, %270 : vector<32x128xf32>
    %c6_233 = arith.constant 6 : index
    %c4_234 = arith.constant 4 : index
    %272 = memref.load %arg3[%c6_233, %c4_234] : memref<8x5xf32, #tpu.memory_space<smem>>
    %c0_235 = arith.constant 0 : index
    %c4_236 = arith.constant 4 : index
    %c0_237 = arith.constant 0 : index
    %c0_238 = arith.constant 0 : index
    %273 = vector.load %arg2[%c0_235, %c4_236, %c0_237, %c0_238] : memref<1x5x32x128xf32, #tpu.memory_space<vmem>>, vector<1x1x32x128xf32>
    %274 = vector.shape_cast %273 : vector<1x1x32x128xf32> to vector<32x128xf32>
    %275 = vector.broadcast %272 : f32 to vector<32x128xf32>
    %276 = arith.mulf %275, %274 : vector<32x128xf32>
    %277 = arith.addf %271, %276 : vector<32x128xf32>
    %278 = arith.negf %277 : vector<32x128xf32>
    %279 = math.exp %278 : vector<32x128xf32>
    %cst_239 = arith.constant 1.000000e+00 : f32
    %280 = vector.broadcast %cst_239 : f32 to vector<32x128xf32>
    %281 = arith.addf %280, %279 : vector<32x128xf32>
    %282 = arith.divf %280, %281 : vector<32x128xf32>
    %283 = arith.mulf %277, %282 : vector<32x128xf32>
    %c0_240 = arith.constant 0 : index
    %c6_241 = arith.constant 6 : index
    %c0_242 = arith.constant 0 : index
    %c0_243 = arith.constant 0 : index
    %284 = vector.load %arg5[%c0_240, %c6_241, %c0_242, %c0_243] : memref<1x8x32x128xf32, #tpu.memory_space<vmem>>, vector<1x1x32x128xf32>
    %285 = vector.shape_cast %284 : vector<1x1x32x128xf32> to vector<32x128xf32>
    %286 = vector.shape_cast %283 : vector<32x128xf32> to vector<1x1x32x128xf32>
    tpu.vector_store %arg5[%c0_240, %c6_241, %c0_242, %c0_243], %286 {strides = array<i32>} : memref<1x8x32x128xf32, #tpu.memory_space<vmem>>, vector<1x1x32x128xf32>,
    %c7 = arith.constant 7 : index
    %287 = memref.load %arg4[%c7] : memref<8xf32, #tpu.memory_space<smem>>
    %c7_244 = arith.constant 7 : index
    %c0_245 = arith.constant 0 : index
    %288 = memref.load %arg3[%c7_244, %c0_245] : memref<8x5xf32, #tpu.memory_space<smem>>
    %c0_246 = arith.constant 0 : index
    %c0_247 = arith.constant 0 : index
    %c0_248 = arith.constant 0 : index
    %c0_249 = arith.constant 0 : index
    %289 = vector.load %arg2[%c0_246, %c0_247, %c0_248, %c0_249] : memref<1x5x32x128xf32, #tpu.memory_space<vmem>>, vector<1x1x32x128xf32>
    %290 = vector.shape_cast %289 : vector<1x1x32x128xf32> to vector<32x128xf32>
    %291 = vector.broadcast %288 : f32 to vector<32x128xf32>
    %292 = arith.mulf %291, %290 : vector<32x128xf32>
    %293 = vector.broadcast %287 : f32 to vector<32x128xf32>
    %294 = arith.addf %293, %292 : vector<32x128xf32>
    %c7_250 = arith.constant 7 : index
    %c1_251 = arith.constant 1 : index
    %295 = memref.load %arg3[%c7_250, %c1_251] : memref<8x5xf32, #tpu.memory_space<smem>>
    %c0_252 = arith.constant 0 : index
    %c1_253 = arith.constant 1 : index
    %c0_254 = arith.constant 0 : index
    %c0_255 = arith.constant 0 : index
    %296 = vector.load %arg2[%c0_252, %c1_253, %c0_254, %c0_255] : memref<1x5x32x128xf32, #tpu.memory_space<vmem>>, vector<1x1x32x128xf32>
    %297 = vector.shape_cast %296 : vector<1x1x32x128xf32> to vector<32x128xf32>
    %298 = vector.broadcast %295 : f32 to vector<32x128xf32>
    %299 = arith.mulf %298, %297 : vector<32x128xf32>
    %300 = arith.addf %294, %299 : vector<32x128xf32>
    %c7_256 = arith.constant 7 : index
    %c2_257 = arith.constant 2 : index
    %301 = memref.load %arg3[%c7_256, %c2_257] : memref<8x5xf32, #tpu.memory_space<smem>>
    %c0_258 = arith.constant 0 : index
    %c2_259 = arith.constant 2 : index
    %c0_260 = arith.constant 0 : index
    %c0_261 = arith.constant 0 : index
    %302 = vector.load %arg2[%c0_258, %c2_259, %c0_260, %c0_261] : memref<1x5x32x128xf32, #tpu.memory_space<vmem>>, vector<1x1x32x128xf32>
    %303 = vector.shape_cast %302 : vector<1x1x32x128xf32> to vector<32x128xf32>
    %304 = vector.broadcast %301 : f32 to vector<32x128xf32>
    %305 = arith.mulf %304, %303 : vector<32x128xf32>
    %306 = arith.addf %300, %305 : vector<32x128xf32>
    %c7_262 = arith.constant 7 : index
    %c3_263 = arith.constant 3 : index
    %307 = memref.load %arg3[%c7_262, %c3_263] : memref<8x5xf32, #tpu.memory_space<smem>>
    %c0_264 = arith.constant 0 : index
    %c3_265 = arith.constant 3 : index
    %c0_266 = arith.constant 0 : index
    %c0_267 = arith.constant 0 : index
    %308 = vector.load %arg2[%c0_264, %c3_265, %c0_266, %c0_267] : memref<1x5x32x128xf32, #tpu.memory_space<vmem>>, vector<1x1x32x128xf32>
    %309 = vector.shape_cast %308 : vector<1x1x32x128xf32> to vector<32x128xf32>
    %310 = vector.broadcast %307 : f32 to vector<32x128xf32>
    %311 = arith.mulf %310, %309 : vector<32x128xf32>
    %312 = arith.addf %306, %311 : vector<32x128xf32>
    %c7_268 = arith.constant 7 : index
    %c4_269 = arith.constant 4 : index
    %313 = memref.load %arg3[%c7_268, %c4_269] : memref<8x5xf32, #tpu.memory_space<smem>>
    %c0_270 = arith.constant 0 : index
    %c4_271 = arith.constant 4 : index
    %c0_272 = arith.constant 0 : index
    %c0_273 = arith.constant 0 : index
    %314 = vector.load %arg2[%c0_270, %c4_271, %c0_272, %c0_273] : memref<1x5x32x128xf32, #tpu.memory_space<vmem>>, vector<1x1x32x128xf32>
    %315 = vector.shape_cast %314 : vector<1x1x32x128xf32> to vector<32x128xf32>
    %316 = vector.broadcast %313 : f32 to vector<32x128xf32>
    %317 = arith.mulf %316, %315 : vector<32x128xf32>
    %318 = arith.addf %312, %317 : vector<32x128xf32>
    %319 = arith.negf %318 : vector<32x128xf32>
    %320 = math.exp %319 : vector<32x128xf32>
    %cst_274 = arith.constant 1.000000e+00 : f32
    %321 = vector.broadcast %cst_274 : f32 to vector<32x128xf32>
    %322 = arith.addf %321, %320 : vector<32x128xf32>
    %323 = arith.divf %321, %322 : vector<32x128xf32>
    %324 = arith.mulf %318, %323 : vector<32x128xf32>
    %c0_275 = arith.constant 0 : index
    %c7_276 = arith.constant 7 : index
    %c0_277 = arith.constant 0 : index
    %c0_278 = arith.constant 0 : index
    %325 = vector.load %arg5[%c0_275, %c7_276, %c0_277, %c0_278] : memref<1x8x32x128xf32, #tpu.memory_space<vmem>>, vector<1x1x32x128xf32>
    %326 = vector.shape_cast %325 : vector<1x1x32x128xf32> to vector<32x128xf32>
    %327 = vector.shape_cast %324 : vector<32x128xf32> to vector<1x1x32x128xf32>
    tpu.vector_store %arg5[%c0_275, %c7_276, %c0_277, %c0_278], %327 {strides = array<i32>} : memref<1x8x32x128xf32, #tpu.memory_space<vmem>>, vector<1x1x32x128xf32>,
    return
  }
  func.func @transform_0(%arg0: i32, %arg1: i32) -> (i32, i32, i32, i32) {
    %c0_i32 = arith.constant 0 : i32
    %c0_i32_0 = arith.constant 0 : i32
    %c0_i32_1 = arith.constant 0 : i32
    return %arg0, %c0_i32, %arg1, %c0_i32_0 : i32, i32, i32, i32
  }
  func.func @transform_1(%arg0: i32, %arg1: i32) -> (i32, i32) {
    %c0_i32 = arith.constant 0 : i32
    %c0_i32_0 = arith.constant 0 : i32
    %c0_i32_1 = arith.constant 0 : i32
    return %c0_i32, %c0_i32_0 : i32, i32
  }
  func.func @transform_2(%arg0: i32, %arg1: i32) -> i32 {
    %c0_i32 = arith.constant 0 : i32
    %c0_i32_0 = arith.constant 0 : i32
    return %c0_i32 : i32
  }
  func.func @transform_3(%arg0: i32, %arg1: i32) -> (i32, i32, i32, i32) {
    %c0_i32 = arith.constant 0 : i32
    %c0_i32_0 = arith.constant 0 : i32
    %c0_i32_1 = arith.constant 0 : i32
    return %arg0, %c0_i32, %arg1, %c0_i32_0 : i32, i32, i32, i32
  }
}

</mosaic_0001>

<llo_original>
// kernel: tpu_custom_call.1
$region0: #{tpu_custom_call.1}
  #allocation0 [shape = 'u32[]', space=smem, size = 0x4, offset = 0x4, fixed_abs, tag = 'smem constant byte address 0x4 - core index']
  #allocation1 [shape = 'u32[72,128]{1,0:T(1,128)}', space=vmem, size = 0x9000, scoped, tag = 'internal scratch']
  %s0 = inlined_call_operand.hbm [shape: f32[1,5,32,128], index: 0, kind: input, shape index: {}]
  %s1 = inlined_call_operand.hbm [shape: f32[8,5], index: 1, kind: input, shape index: {}]
  %s2 = inlined_call_operand.vmem [shape: f32[8], index: 2, kind: input, shape index: {}]
  %s3 = inlined_call_operand.hbm [shape: f32[1,8,32,128], index: 3, kind: output, shape index: {}]
  %s4 = sld [smem:[#allocation0]]
  $region34: #{tpu_custom_call.1} parent=0
    _
  %s6 = ssub.s32 1, %s4
  %s7 = scalar_select 0, %s6, %s4
  $region1: #{tpu_custom_call.1} parent=0
    #allocation2 [shape = 'u8[81920]{0}', space=vmem, size = 0x14000, scoped, tag = 'input window, operand 0, single buffered']
    #allocation3 [shape = 's32[1]{0}', space=sflag, size = 0x4, scoped, tag = 'scoped memory for tpu_custom_call.1']
    #allocation4 [shape = 's32[1]{0}', space=sflag, size = 0x4, scoped, tag = 'scoped memory for tpu_custom_call.1']
    #allocation5 [shape = 's32[1]{0}', space=sflag, size = 0x4, scoped, tag = 'scoped memory for tpu_custom_call.1']
    #allocation6 [shape = 's32[1]{0}', space=sflag, size = 0x4, scoped, tag = 'scoped memory for tpu_custom_call.1']
    #allocation7 [shape = 'u8[4096]{0}', space=smem, size = 0x1000, scoped, tag = 'input window, operand 1, single buffered']
    #allocation8 [shape = 'u8[512]{0}', space=smem, size = 0x200, scoped, tag = 'input window, operand 2, single buffered']
    #allocation9 [shape = 'u8[131072]{0}', space=vmem, size = 0x20000, scoped, tag = 'output window, operand 0, single buffered']
    %8 = vsyncpa [#allocation3], 0
    %9 = vsyncpa [#allocation5], 0
    %10 = vsyncpa [#allocation6], 0
    %11 = vsyncpa [#allocation4], 0
    // Predicated region
    $region2: #{tpu_custom_call.1} parent=1 // pred_check
      _
    $region3: #{tpu_custom_call.1} parent=1 // pred_check_branch
      %13 = sbr.rel (0) target = $region5
    $region4: #{tpu_custom_call.1} parent=1 // pred_region
      %15 = vsyncadd [#allocation3], 0
      %s16 = sshll.u32 %s0, 4
      %s17 = int_to_ptr.hbm [resolvable:$true] %s16
      %s18 = sshll.u32 [#allocation2], 4
      %s19 = int_to_ptr.vmem [resolvable:$true] %s18
      %24 = dma.hbm_to_vmem [thread:$0]  %s17, 2560, %s19, [#allocation3], 128, 128, 8
    $region5: #{tpu_custom_call.1} parent=1 // pred_fallthru
      _
    // Predicated region
    $region6: #{tpu_custom_call.1} parent=1 // pred_check
      _
    $region7: #{tpu_custom_call.1} parent=1 // pred_check_branch
      %26 = sbr.rel (0) target = $region9
    $region8: #{tpu_custom_call.1} parent=1 // pred_region
      %28 = vsyncadd [#allocation5], 0
      %s30 = sshll.u32 %s1, 4
      %s31 = int_to_ptr.hbm [resolvable:$true] %s30
      %33 = dma.hbm_to_smem %s31, 128, [#allocation7], [#allocation5]
    $region9: #{tpu_custom_call.1} parent=1 // pred_fallthru
      _
    // Predicated region
    $region10: #{tpu_custom_call.1} parent=1 // pred_check
      _
    $region11: #{tpu_custom_call.1} parent=1 // pred_check_branch
      %35 = sbr.rel (0) target = $region13
    $region12: #{tpu_custom_call.1} parent=1 // pred_region
      %37 = vsyncadd [#allocation6], 0
      %s39 = sshll.u32 %s2, 4
      %s40 = int_to_ptr.vmem [resolvable:$true] %s39
      %42 = dma.vmem_to_smem %s40, 16, [#allocation8], [#allocation6]
    $region13: #{tpu_custom_call.1} parent=1 // pred_fallthru
      _
    // Predicated region
    $region14: #{tpu_custom_call.1} parent=1 // pred_check
      _
    $region15: #{tpu_custom_call.1} parent=1 // pred_check_branch
      %44 = sbr.rel (0) target = $region17
    $region16: #{tpu_custom_call.1} parent=1 // pred_region
      %46 = dma.done [#allocation3], 2560
    $region17: #{tpu_custom_call.1} parent=1 // pred_fallthru
      _
    // Predicated region
    $region18: #{tpu_custom_call.1} parent=1 // pred_check
      _
    $region19: #{tpu_custom_call.1} parent=1 // pred_check_branch
      %48 = sbr.rel (0) target = $region21
    $region20: #{tpu_custom_call.1} parent=1 // pred_region
      %50 = dma.done [#allocation5], 128
    $region21: #{tpu_custom_call.1} parent=1 // pred_fallthru
      _
    // Predicated region
    $region22: #{tpu_custom_call.1} parent=1 // pred_check
      _
    $region23: #{tpu_custom_call.1} parent=1 // pred_check_branch
      %52 = sbr.rel (0) target = $region25
    $region24: #{tpu_custom_call.1} parent=1 // pred_region
      %54 = dma.done [#allocation6], 16
    $region25: #{tpu_custom_call.1} parent=1 // pred_fallthru
      _
    %55 = sfence
    %s56 = sld [smem:[#allocation8]]
    %s57 = sld [smem:[#allocation7]]
    %v58 = vld [vmem:[#allocation2] sm:$0xff]
    %v59 = vld [vmem:[#allocation2 + $0x8] sm:$0xff]
    %v60 = vld [vmem:[#allocation2 + $0x10] sm:$0xff]
    %v61 = vld [vmem:[#allocation2 + $0x18] sm:$0xff]
    %v62 = vstv %s57
    %v63 = vmul.f32 %v62, %v58
    %v64 = vmul.f32 %v62, %v59
    %v65 = vmul.f32 %v62, %v60
    %v66 = vmul.f32 %v62, %v61
    %v67 = vstv %s56
    %v68 = vadd.f32 %v67, %v63
    %v69 = vadd.f32 %v67, %v64
    %v70 = vadd.f32 %v67, %v65
    %v71 = vadd.f32 %v67, %v66
    %s72 = sld [smem:[#allocation7 + $0x1]]
    %s73 = scalar_lea.vmem [#allocation2], 32
    %v74 = vld [vmem:[%s73] sm:$0xff]
    %v75 = vld [vmem:[%s73 + $0x8] sm:$0xff]
    %v76 = vld [vmem:[%s73 + $0x10] sm:$0xff]
    %v77 = vld [vmem:[%s73 + $0x18] sm:$0xff]
    %v78 = vstv %s72
    %v79 = vmul.f32 %v78, %v74
    %v80 = vmul.f32 %v78, %v75
    %v81 = vmul.f32 %v78, %v76
    %v82 = vmul.f32 %v78, %v77
    %v83 = vadd.f32 %v68, %v79
    %v84 = vadd.f32 %v69, %v80
    %v85 = vadd.f32 %v70, %v81
    %v86 = vadd.f32 %v71, %v82
    %s87 = sld [smem:[#allocation7 + $0x2]]
    %s88 = scalar_lea.vmem [#allocation2], 64
    %v89 = vld [vmem:[%s88] sm:$0xff]
    %v90 = vld [vmem:[%s88 + $0x8] sm:$0xff]
    %v91 = vld [vmem:[%s88 + $0x10] sm:$0xff]
    %v92 = vld [vmem:[%s88 + $0x18] sm:$0xff]
    %v93 = vstv %s87
    %v94 = vmul.f32 %v93, %v89
    %v95 = vmul.f32 %v93, %v90
    %v96 = vmul.f32 %v93, %v91
    %v97 = vmul.f32 %v93, %v92
    %v98 = vadd.f32 %v83, %v94
    %v99 = vadd.f32 %v84, %v95
    %v100 = vadd.f32 %v85, %v96
    %v101 = vadd.f32 %v86, %v97
    %s102 = sld [smem:[#allocation7 + $0x3]]
    %s103 = scalar_lea.vmem [#allocation2], 96
    %v104 = vld [vmem:[%s103] sm:$0xff]
    %v105 = vld [vmem:[%s103 + $0x8] sm:$0xff]
    %v106 = vld [vmem:[%s103 + $0x10] sm:$0xff]
    %v107 = vld [vmem:[%s103 + $0x18] sm:$0xff]
    %v108 = vstv %s102
    %v109 = vmul.f32 %v108, %v104
    %v110 = vmul.f32 %v108, %v105
    %v111 = vmul.f32 %v108, %v106
    %v112 = vmul.f32 %v108, %v107
    %v113 = vadd.f32 %v98, %v109
    %v114 = vadd.f32 %v99, %v110
    %v115 = vadd.f32 %v100, %v111
    %v116 = vadd.f32 %v101, %v112
    %s117 = sld [smem:[#allocation7 + $0x4]]
    %s118 = scalar_lea.vmem [#allocation2], 128
    %v119 = vld [vmem:[%s118] sm:$0xff]
    %v120 = vld [vmem:[%s118 + $0x8] sm:$0xff]
    %v121 = vld [vmem:[%s118 + $0x10] sm:$0xff]
    %v122 = vld [vmem:[%s118 + $0x18] sm:$0xff]
    %v123 = vstv %s117
    %v124 = vmul.f32 %v123, %v119
    %v125 = vmul.f32 %v123, %v120
    %v126 = vmul.f32 %v123, %v121
    %v127 = vmul.f32 %v123, %v122
    %v128 = vadd.f32 %v113, %v124
    %v129 = vadd.f32 %v114, %v125
    %v130 = vadd.f32 %v115, %v126
    %v131 = vadd.f32 %v116, %v127
    %v132 = vxor.u32 %v128, 2147483648
    %v133 = vxor.u32 %v129, 2147483648
    %v134 = vxor.u32 %v130, 2147483648
    %v135 = vxor.u32 %v131, 2147483648
    %v136 = vmul.f32 %v132, 1.442695
    %v137 = vpow.pop %v136
    %v138 = vmul.f32 %v133, 1.442695
    %v139 = vpow.pop %v138
    %v140 = vmul.f32 %v134, 1.442695
    %v141 = vpow.pop %v140
    %v142 = vmul.f32 %v135, 1.442695
    %v143 = vpow.pop %v142
    %v144 = vadd.f32 %v137, 1.0
    %v145 = vadd.f32 %v139, 1.0
    %v146 = vadd.f32 %v141, 1.0
    %v147 = vadd.f32 %v143, 1.0
    %v148 = vrcp.pop %v144
    %v149 = vmul.f32 %v144, %v148
    %v150 = vsub.f32 1.0, %v149
    %v151 = vmul.f32 %v148, %v150
    %v152 = vadd.f32 %v148, %v151
    %vm153 = vweird.f32 %v144
    %vm154 = vweird.f32 %v148
    %vm155 = vmor %vm153, %vm154
    %v156 = vsel %vm155, %v148, %v152
    %v157 = vand.u32 2147483647, %v144
    %vm158 = vcmp.eq.f32.partialorder %v157, 8.507059e+37
    %v159 = vand.u32 %v144, 2147483648
    %v160 = vor.u32 1.1754944e-38, %v159
    %v161 = vsel %vm158, %v160, %v156
    %v162 = vmul.f32 1.0, %v161
    %v163 = vrcp.pop %v145
    %v164 = vmul.f32 %v145, %v163
    %v165 = vsub.f32 1.0, %v164
    %v166 = vmul.f32 %v163, %v165
    %v167 = vadd.f32 %v163, %v166
    %vm168 = vweird.f32 %v145
    %vm169 = vweird.f32 %v163
    %vm170 = vmor %vm168, %vm169
    %v171 = vsel %vm170, %v163, %v167
    %v172 = vand.u32 2147483647, %v145
    %vm173 = vcmp.eq.f32.partialorder %v172, 8.507059e+37
    %v174 = vand.u32 %v145, 2147483648
    %v175 = vor.u32 1.1754944e-38, %v174
    %v176 = vsel %vm173, %v175, %v171
    %v177 = vmul.f32 1.0, %v176
    %v178 = vrcp.pop %v146
    %v179 = vmul.f32 %v146, %v178
    %v180 = vsub.f32 1.0, %v179
    %v181 = vmul.f32 %v178, %v180
    %v182 = vadd.f32 %v178, %v181
    %vm183 = vweird.f32 %v146
    %vm184 = vweird.f32 %v178
    %vm185 = vmor %vm183, %vm184
    %v186 = vsel %vm185, %v178, %v182
    %v187 = vand.u32 2147483647, %v146
    %vm188 = vcmp.eq.f32.partialorder %v187, 8.507059e+37
    %v189 = vand.u32 %v146, 2147483648
    %v190 = vor.u32 1.1754944e-38, %v189
    %v191 = vsel %vm188, %v190, %v186
    %v192 = vmul.f32 1.0, %v191
    %v193 = vrcp.pop %v147
    %v194 = vmul.f32 %v147, %v193
    %v195 = vsub.f32 1.0, %v194
    %v196 = vmul.f32 %v193, %v195
    %v197 = vadd.f32 %v193, %v196
    %vm198 = vweird.f32 %v147
    %vm199 = vweird.f32 %v193
    %vm200 = vmor %vm198, %vm199
    %v201 = vsel %vm200, %v193, %v197
    %v202 = vand.u32 2147483647, %v147
    %vm203 = vcmp.eq.f32.partialorder %v202, 8.507059e+37
    %v204 = vand.u32 %v147, 2147483648
    %v205 = vor.u32 1.1754944e-38, %v204
    %v206 = vsel %vm203, %v205, %v201
    %v207 = vmul.f32 1.0, %v206
    %v208 = vmul.f32 %v128, %v162
    %v209 = vmul.f32 %v129, %v177
    %v210 = vmul.f32 %v130, %v192
    %v211 = vmul.f32 %v131, %v207
    %212 = vst [vmem:[#allocation9] sm:$0xff] %v208
    %213 = vst [vmem:[#allocation9 + $0x8] sm:$0xff] %v209
    %214 = vst [vmem:[#allocation9 + $0x10] sm:$0xff] %v210
    %215 = vst [vmem:[#allocation9 + $0x18] sm:$0xff] %v211
    %s216 = sld [smem:[#allocation8 + $0x1]]
    %s217 = sld [smem:[#allocation7 + $0x80]]
    %v218 = vld [vmem:[#allocation2] sm:$0xff]
    %v219 = vld [vmem:[#allocation2 + $0x8] sm:$0xff]
    %v220 = vld [vmem:[#allocation2 + $0x10] sm:$0xff]
    %v221 = vld [vmem:[#allocation2 + $0x18] sm:$0xff]
    %v222 = vstv %s217
    %v223 = vmul.f32 %v222, %v218
    %v224 = vmul.f32 %v222, %v219
    %v225 = vmul.f32 %v222, %v220
    %v226 = vmul.f32 %v222, %v221
    %v227 = vstv %s216
    %v228 = vadd.f32 %v227, %v223
    %v229 = vadd.f32 %v227, %v224
    %v230 = vadd.f32 %v227, %v225
    %v231 = vadd.f32 %v227, %v226
    %s232 = sld [smem:[#allocation7 + $0x81]]
    %v233 = vld [vmem:[%s73] sm:$0xff]
    %v234 = vld [vmem:[%s73 + $0x8] sm:$0xff]
    %v235 = vld [vmem:[%s73 + $0x10] sm:$0xff]
    %v236 = vld [vmem:[%s73 + $0x18] sm:$0xff]
    %v237 = vstv %s232
    %v238 = vmul.f32 %v237, %v233
    %v239 = vmul.f32 %v237, %v234
    %v240 = vmul.f32 %v237, %v235
    %v241 = vmul.f32 %v237, %v236
    %v242 = vadd.f32 %v228, %v238
    %v243 = vadd.f32 %v229, %v239
    %v244 = vadd.f32 %v230, %v240
    %v245 = vadd.f32 %v231, %v241
    %s246 = sld [smem:[#allocation7 + $0x82]]
    %v247 = vld [vmem:[%s88] sm:$0xff]
    %v248 = vld [vmem:[%s88 + $0x8] sm:$0xff]
    %v249 = vld [vmem:[%s88 + $0x10] sm:$0xff]
    %v250 = vld [vmem:[%s88 + $0x18] sm:$0xff]
    %v251 = vstv %s246
    %v252 = vmul.f32 %v251, %v247
    %v253 = vmul.f32 %v251, %v248
    %v254 = vmul.f32 %v251, %v249
    %v255 = vmul.f32 %v251, %v250
    %v256 = vadd.f32 %v242, %v252
    %v257 = vadd.f32 %v243, %v253
    %v258 = vadd.f32 %v244, %v254
    %v259 = vadd.f32 %v245, %v255
    %s260 = sld [smem:[#allocation7 + $0x83]]
    %v261 = vld [vmem:[%s103] sm:$0xff]
    %v262 = vld [vmem:[%s103 + $0x8] sm:$0xff]
    %v263 = vld [vmem:[%s103 + $0x10] sm:$0xff]
    %v264 = vld [vmem:[%s103 + $0x18] sm:$0xff]
    %v265 = vstv %s260
    %v266 = vmul.f32 %v265, %v261
    %v267 = vmul.f32 %v265, %v262
    %v268 = vmul.f32 %v265, %v263
    %v269 = vmul.f32 %v265, %v264
    %v270 = vadd.f32 %v256, %v266
    %v271 = vadd.f32 %v257, %v267
    %v272 = vadd.f32 %v258, %v268
    %v273 = vadd.f32 %v259, %v269
    %s274 = sld [smem:[#allocation7 + $0x84]]
    %v275 = vld [vmem:[%s118] sm:$0xff]
    %v276 = vld [vmem:[%s118 + $0x8] sm:$0xff]
    %v277 = vld [vmem:[%s118 + $0x10] sm:$0xff]
    %v278 = vld [vmem:[%s118 + $0x18] sm:$0xff]
    %v279 = vstv %s274
    %v280 = vmul.f32 %v279, %v275
    %v281 = vmul.f32 %v279, %v276
    %v282 = vmul.f32 %v279, %v277
    %v283 = vmul.f32 %v279, %v278
    %v284 = vadd.f32 %v270, %v280
    %v285 = vadd.f32 %v271, %v281
    %v286 = vadd.f32 %v272, %v282
    %v287 = vadd.f32 %v273, %v283
    %v288 = vxor.u32 %v284, 2147483648
    %v289 = vxor.u32 %v285, 2147483648
    %v290 = vxor.u32 %v286, 2147483648
    %v291 = vxor.u32 %v287, 2147483648
    %v292 = vmul.f32 %v288, 1.442695
    %v293 = vpow.pop %v292
    %v294 = vmul.f32 %v289, 1.442695
    %v295 = vpow.pop %v294
    %v296 = vmul.f32 %v290, 1.442695
    %v297 = vpow.pop %v296
    %v298 = vmul.f32 %v291, 1.442695
    %v299 = vpow.pop %v298
    %v300 = vadd.f32 %v293, 1.0
    %v301 = vadd.f32 %v295, 1.0
    %v302 = vadd.f32 %v297, 1.0
    %v303 = vadd.f32 %v299, 1.0
    %v304 = vrcp.pop %v300
    %v305 = vmul.f32 %v300, %v304
    %v306 = vsub.f32 1.0, %v305
    %v307 = vmul.f32 %v304, %v306
    %v308 = vadd.f32 %v304, %v307
    %vm309 = vweird.f32 %v300
    %vm310 = vweird.f32 %v304
    %vm311 = vmor %vm309, %vm310
    %v312 = vsel %vm311, %v304, %v308
    %v313 = vand.u32 2147483647, %v300
    %vm314 = vcmp.eq.f32.partialorder %v313, 8.507059e+37
    %v315 = vand.u32 %v300, 2147483648
    %v316 = vor.u32 1.1754944e-38, %v315
    %v317 = vsel %vm314, %v316, %v312
    %v318 = vmul.f32 1.0, %v317
    %v319 = vrcp.pop %v301
    %v320 = vmul.f32 %v301, %v319
    %v321 = vsub.f32 1.0, %v320
    %v322 = vmul.f32 %v319, %v321
    %v323 = vadd.f32 %v319, %v322
    %vm324 = vweird.f32 %v301
    %vm325 = vweird.f32 %v319
    %vm326 = vmor %vm324, %vm325
    %v327 = vsel %vm326, %v319, %v323
    %v328 = vand.u32 2147483647, %v301
    %vm329 = vcmp.eq.f32.partialorder %v328, 8.507059e+37
    %v330 = vand.u32 %v301, 2147483648
    %v331 = vor.u32 1.1754944e-38, %v330
    %v332 = vsel %vm329, %v331, %v327
    %v333 = vmul.f32 1.0, %v332
    %v334 = vrcp.pop %v302
    %v335 = vmul.f32 %v302, %v334
    %v336 = vsub.f32 1.0, %v335
    %v337 = vmul.f32 %v334, %v336
    %v338 = vadd.f32 %v334, %v337
    %vm339 = vweird.f32 %v302
    %vm340 = vweird.f32 %v334
    %vm341 = vmor %vm339, %vm340
    %v342 = vsel %vm341, %v334, %v338
    %v343 = vand.u32 2147483647, %v302
    %vm344 = vcmp.eq.f32.partialorder %v343, 8.507059e+37
    %v345 = vand.u32 %v302, 2147483648
    %v346 = vor.u32 1.1754944e-38, %v345
    %v347 = vsel %vm344, %v346, %v342
    %v348 = vmul.f32 1.0, %v347
    %v349 = vrcp.pop %v303
    %v350 = vmul.f32 %v303, %v349
    %v351 = vsub.f32 1.0, %v350
    %v352 = vmul.f32 %v349, %v351
    %v353 = vadd.f32 %v349, %v352
    %vm354 = vweird.f32 %v303
    %vm355 = vweird.f32 %v349
    %vm356 = vmor %vm354, %vm355
    %v357 = vsel %vm356, %v349, %v353
    %v358 = vand.u32 2147483647, %v303
    %vm359 = vcmp.eq.f32.partialorder %v358, 8.507059e+37
    %v360 = vand.u32 %v303, 2147483648
    %v361 = vor.u32 1.1754944e-38, %v360
    %v362 = vsel %vm359, %v361, %v357
    %v363 = vmul.f32 1.0, %v362
    %v364 = vmul.f32 %v284, %v318
    %v365 = vmul.f32 %v285, %v333
    %v366 = vmul.f32 %v286, %v348
    %v367 = vmul.f32 %v287, %v363
    %s368 = scalar_lea.vmem [#allocation9], 32
    %369 = vst [vmem:[%s368] sm:$0xff] %v364
    %370 = vst [vmem:[%s368 + $0x8] sm:$0xff] %v365
    %371 = vst [vmem:[%s368 + $0x10] sm:$0xff] %v366
    %372 = vst [vmem:[%s368 + $0x18] sm:$0xff] %v367
    %s373 = sld [smem:[#allocation8 + $0x2]]
    %s374 = sld [smem:[#allocation7 + $0x100]]
    %v375 = vld [vmem:[#allocation2] sm:$0xff]
    %v376 = vld [vmem:[#allocation2 + $0x8] sm:$0xff]
    %v377 = vld [vmem:[#allocation2 + $0x10] sm:$0xff]
    %v378 = vld [vmem:[#allocation2 + $0x18] sm:$0xff]
    %v379 = vstv %s374
    %v380 = vmul.f32 %v379, %v375
    %v381 = vmul.f32 %v379, %v376
    %v382 = vmul.f32 %v379, %v377
    %v383 = vmul.f32 %v379, %v378
    %v384 = vstv %s373
    %v385 = vadd.f32 %v384, %v380
    %v386 = vadd.f32 %v384, %v381
    %v387 = vadd.f32 %v384, %v382
    %v388 = vadd.f32 %v384, %v383
    %s389 = sld [smem:[#allocation7 + $0x101]]
    %v390 = vld [vmem:[%s73] sm:$0xff]
    %v391 = vld [vmem:[%s73 + $0x8] sm:$0xff]
    %v392 = vld [vmem:[%s73 + $0x10] sm:$0xff]
    %v393 = vld [vmem:[%s73 + $0x18] sm:$0xff]
    %v394 = vstv %s389
    %v395 = vmul.f32 %v394, %v390
    %v396 = vmul.f32 %v394, %v391
    %v397 = vmul.f32 %v394, %v392
    %v398 = vmul.f32 %v394, %v393
    %v399 = vadd.f32 %v385, %v395
    %v400 = vadd.f32 %v386, %v396
    %v401 = vadd.f32 %v387, %v397
    %v402 = vadd.f32 %v388, %v398
    %s403 = sld [smem:[#allocation7 + $0x102]]
    %v404 = vld [vmem:[%s88] sm:$0xff]
    %v405 = vld [vmem:[%s88 + $0x8] sm:$0xff]
    %v406 = vld [vmem:[%s88 + $0x10] sm:$0xff]
    %v407 = vld [vmem:[%s88 + $0x18] sm:$0xff]
    %v408 = vstv %s403
    %v409 = vmul.f32 %v408, %v404
    %v410 = vmul.f32 %v408, %v405
    %v411 = vmul.f32 %v408, %v406
    %v412 = vmul.f32 %v408, %v407
    %v413 = vadd.f32 %v399, %v409
    %v414 = vadd.f32 %v400, %v410
    %v415 = vadd.f32 %v401, %v411
    %v416 = vadd.f32 %v402, %v412
    %s417 = sld [smem:[#allocation7 + $0x103]]
    %v418 = vld [vmem:[%s103] sm:$0xff]
    %v419 = vld [vmem:[%s103 + $0x8] sm:$0xff]
    %v420 = vld [vmem:[%s103 + $0x10] sm:$0xff]
    %v421 = vld [vmem:[%s103 + $0x18] sm:$0xff]
    %v422 = vstv %s417
    %v423 = vmul.f32 %v422, %v418
    %v424 = vmul.f32 %v422, %v419
    %v425 = vmul.f32 %v422, %v420
    %v426 = vmul.f32 %v422, %v421
    %v427 = vadd.f32 %v413, %v423
    %v428 = vadd.f32 %v414, %v424
    %v429 = vadd.f32 %v415, %v425
    %v430 = vadd.f32 %v416, %v426
    %s431 = sld [smem:[#allocation7 + $0x104]]
    %v432 = vld [vmem:[%s118] sm:$0xff]
    %v433 = vld [vmem:[%s118 + $0x8] sm:$0xff]
    %v434 = vld [vmem:[%s118 + $0x10] sm:$0xff]
    %v435 = vld [vmem:[%s118 + $0x18] sm:$0xff]
    %v436 = vstv %s431
    %v437 = vmul.f32 %v436, %v432
    %v438 = vmul.f32 %v436, %v433
    %v439 = vmul.f32 %v436, %v434
    %v440 = vmul.f32 %v436, %v435
    %v441 = vadd.f32 %v427, %v437
    %v442 = vadd.f32 %v428, %v438
    %v443 = vadd.f32 %v429, %v439
    %v444 = vadd.f32 %v430, %v440
    %v445 = vxor.u32 %v441, 2147483648
    %v446 = vxor.u32 %v442, 2147483648
    %v447 = vxor.u32 %v443, 2147483648
    %v448 = vxor.u32 %v444, 2147483648
    %v449 = vmul.f32 %v445, 1.442695
    %v450 = vpow.pop %v449
    %v451 = vmul.f32 %v446, 1.442695
    %v452 = vpow.pop %v451
    %v453 = vmul.f32 %v447, 1.442695
    %v454 = vpow.pop %v453
    %v455 = vmul.f32 %v448, 1.442695
    %v456 = vpow.pop %v455
    %v457 = vadd.f32 %v450, 1.0
    %v458 = vadd.f32 %v452, 1.0
    %v459 = vadd.f32 %v454, 1.0
    %v460 = vadd.f32 %v456, 1.0
    %v461 = vrcp.pop %v457
    %v462 = vmul.f32 %v457, %v461
    %v463 = vsub.f32 1.0, %v462
    %v464 = vmul.f32 %v461, %v463
    %v465 = vadd.f32 %v461, %v464
    %vm466 = vweird.f32 %v457
    %vm467 = vweird.f32 %v461
    %vm468 = vmor %vm466, %vm467
    %v469 = vsel %vm468, %v461, %v465
    %v470 = vand.u32 2147483647, %v457
    %vm471 = vcmp.eq.f32.partialorder %v470, 8.507059e+37
    %v472 = vand.u32 %v457, 2147483648
    %v473 = vor.u32 1.1754944e-38, %v472
    %v474 = vsel %vm471, %v473, %v469
    %v475 = vmul.f32 1.0, %v474
    %v476 = vrcp.pop %v458
    %v477 = vmul.f32 %v458, %v476
    %v478 = vsub.f32 1.0, %v477
    %v479 = vmul.f32 %v476, %v478
    %v480 = vadd.f32 %v476, %v479
    %vm481 = vweird.f32 %v458
    %vm482 = vweird.f32 %v476
    %vm483 = vmor %vm481, %vm482
    %v484 = vsel %vm483, %v476, %v480
    %v485 = vand.u32 2147483647, %v458
    %vm486 = vcmp.eq.f32.partialorder %v485, 8.507059e+37
    %v487 = vand.u32 %v458, 2147483648
    %v488 = vor.u32 1.1754944e-38, %v487
    %v489 = vsel %vm486, %v488, %v484
    %v490 = vmul.f32 1.0, %v489
    %v491 = vrcp.pop %v459
    %v492 = vmul.f32 %v459, %v491
    %v493 = vsub.f32 1.0, %v492
    %v494 = vmul.f32 %v491, %v493
    %v495 = vadd.f32 %v491, %v494
    %vm496 = vweird.f32 %v459
    %vm497 = vweird.f32 %v491
    %vm498 = vmor %vm496, %vm497
    %v499 = vsel %vm498, %v491, %v495
    %v500 = vand.u32 2147483647, %v459
    %vm501 = vcmp.eq.f32.partialorder %v500, 8.507059e+37
    %v502 = vand.u32 %v459, 2147483648
    %v503 = vor.u32 1.1754944e-38, %v502
    %v504 = vsel %vm501, %v503, %v499
    %v505 = vmul.f32 1.0, %v504
    %v506 = vrcp.pop %v460
    %v507 = vmul.f32 %v460, %v506
    %v508 = vsub.f32 1.0, %v507
    %v509 = vmul.f32 %v506, %v508
    %v510 = vadd.f32 %v506, %v509
    %vm511 = vweird.f32 %v460
    %vm512 = vweird.f32 %v506
    %vm513 = vmor %vm511, %vm512
    %v514 = vsel %vm513, %v506, %v510
    %v515 = vand.u32 2147483647, %v460
    %vm516 = vcmp.eq.f32.partialorder %v515, 8.507059e+37
    %v517 = vand.u32 %v460, 2147483648
    %v518 = vor.u32 1.1754944e-38, %v517
    %v519 = vsel %vm516, %v518, %v514
    %v520 = vmul.f32 1.0, %v519
    %v521 = vmul.f32 %v441, %v475
    %v522 = vmul.f32 %v442, %v490
    %v523 = vmul.f32 %v443, %v505
    %v524 = vmul.f32 %v444, %v520
    %s525 = scalar_lea.vmem [#allocation9], 64
    %526 = vst [vmem:[%s525] sm:$0xff] %v521
    %527 = vst [vmem:[%s525 + $0x8] sm:$0xff] %v522
    %528 = vst [vmem:[%s525 + $0x10] sm:$0xff] %v523
    %529 = vst [vmem:[%s525 + $0x18] sm:$0xff] %v524
    %s530 = sld [smem:[#allocation8 + $0x3]]
    %s531 = sld [smem:[#allocation7 + $0x180]]
    %v532 = vld [vmem:[#allocation2] sm:$0xff]
    %v533 = vld [vmem:[#allocation2 + $0x8] sm:$0xff]
    %v534 = vld [vmem:[#allocation2 + $0x10] sm:$0xff]
    %v535 = vld [vmem:[#allocation2 + $0x18] sm:$0xff]
    %v536 = vstv %s531
    %v537 = vmul.f32 %v536, %v532
    %v538 = vmul.f32 %v536, %v533
    %v539 = vmul.f32 %v536, %v534
    %v540 = vmul.f32 %v536, %v535
    %v541 = vstv %s530
    %v542 = vadd.f32 %v541, %v537
    %v543 = vadd.f32 %v541, %v538
    %v544 = vadd.f32 %v541, %v539
    %v545 = vadd.f32 %v541, %v540
    %s546 = sld [smem:[#allocation7 + $0x181]]
    %v547 = vld [vmem:[%s73] sm:$0xff]
    %v548 = vld [vmem:[%s73 + $0x8] sm:$0xff]
    %v549 = vld [vmem:[%s73 + $0x10] sm:$0xff]
    %v550 = vld [vmem:[%s73 + $0x18] sm:$0xff]
    %v551 = vstv %s546
    %v552 = vmul.f32 %v551, %v547
    %v553 = vmul.f32 %v551, %v548
    %v554 = vmul.f32 %v551, %v549
    %v555 = vmul.f32 %v551, %v550
    %v556 = vadd.f32 %v542, %v552
    %v557 = vadd.f32 %v543, %v553
    %v558 = vadd.f32 %v544, %v554
    %v559 = vadd.f32 %v545, %v555
    %s560 = sld [smem:[#allocation7 + $0x182]]
    %v561 = vld [vmem:[%s88] sm:$0xff]
    %v562 = vld [vmem:[%s88 + $0x8] sm:$0xff]
    %v563 = vld [vmem:[%s88 + $0x10] sm:$0xff]
    %v564 = vld [vmem:[%s88 + $0x18] sm:$0xff]
    %v565 = vstv %s560
    %v566 = vmul.f32 %v565, %v561
    %v567 = vmul.f32 %v565, %v562
    %v568 = vmul.f32 %v565, %v563
    %v569 = vmul.f32 %v565, %v564
    %v570 = vadd.f32 %v556, %v566
    %v571 = vadd.f32 %v557, %v567
    %v572 = vadd.f32 %v558, %v568
    %v573 = vadd.f32 %v559, %v569
    %s574 = sld [smem:[#allocation7 + $0x183]]
    %v575 = vld [vmem:[%s103] sm:$0xff]
    %v576 = vld [vmem:[%s103 + $0x8] sm:$0xff]
    %v577 = vld [vmem:[%s103 + $0x10] sm:$0xff]
    %v578 = vld [vmem:[%s103 + $0x18] sm:$0xff]
    %v579 = vstv %s574
    %v580 = vmul.f32 %v579, %v575
    %v581 = vmul.f32 %v579, %v576
    %v582 = vmul.f32 %v579, %v577
    %v583 = vmul.f32 %v579, %v578
    %v584 = vadd.f32 %v570, %v580
    %v585 = vadd.f32 %v571, %v581
    %v586 = vadd.f32 %v572, %v582
    %v587 = vadd.f32 %v573, %v583
    %s588 = sld [smem:[#allocation7 + $0x184]]
    %v589 = vld [vmem:[%s118] sm:$0xff]
    %v590 = vld [vmem:[%s118 + $0x8] sm:$0xff]
    %v591 = vld [vmem:[%s118 + $0x10] sm:$0xff]
    %v592 = vld [vmem:[%s118 + $0x18] sm:$0xff]
    %v593 = vstv %s588
    %v594 = vmul.f32 %v593, %v589
    %v595 = vmul.f32 %v593, %v590
    %v596 = vmul.f32 %v593, %v591
    %v597 = vmul.f32 %v593, %v592
    %v598 = vadd.f32 %v584, %v594
    %v599 = vadd.f32 %v585, %v595
    %v600 = vadd.f32 %v586, %v596
    %v601 = vadd.f32 %v587, %v597
    %v602 = vxor.u32 %v598, 2147483648
    %v603 = vxor.u32 %v599, 2147483648
    %v604 = vxor.u32 %v600, 2147483648
    %v605 = vxor.u32 %v601, 2147483648
    %v606 = vmul.f32 %v602, 1.442695
    %v607 = vpow.pop %v606
    %v608 = vmul.f32 %v603, 1.442695
    %v609 = vpow.pop %v608
    %v610 = vmul.f32 %v604, 1.442695
    %v611 = vpow.pop %v610
    %v612 = vmul.f32 %v605, 1.442695
    %v613 = vpow.pop %v612
    %v614 = vadd.f32 %v607, 1.0
    %v615 = vadd.f32 %v609, 1.0
    %v616 = vadd.f32 %v611, 1.0
    %v617 = vadd.f32 %v613, 1.0
    %v618 = vrcp.pop %v614
    %v619 = vmul.f32 %v614, %v618
    %v620 = vsub.f32 1.0, %v619
    %v621 = vmul.f32 %v618, %v620
    %v622 = vadd.f32 %v618, %v621
    %vm623 = vweird.f32 %v614
    %vm624 = vweird.f32 %v618
    %vm625 = vmor %vm623, %vm624
    %v626 = vsel %vm625, %v618, %v622
    %v627 = vand.u32 2147483647, %v614
    %vm628 = vcmp.eq.f32.partialorder %v627, 8.507059e+37
    %v629 = vand.u32 %v614, 2147483648
    %v630 = vor.u32 1.1754944e-38, %v629
    %v631 = vsel %vm628, %v630, %v626
    %v632 = vmul.f32 1.0, %v631
    %v633 = vrcp.pop %v615
    %v634 = vmul.f32 %v615, %v633
    %v635 = vsub.f32 1.0, %v634
    %v636 = vmul.f32 %v633, %v635
    %v637 = vadd.f32 %v633, %v636
    %vm638 = vweird.f32 %v615
    %vm639 = vweird.f32 %v633
    %vm640 = vmor %vm638, %vm639
    %v641 = vsel %vm640, %v633, %v637
    %v642 = vand.u32 2147483647, %v615
    %vm643 = vcmp.eq.f32.partialorder %v642, 8.507059e+37
    %v644 = vand.u32 %v615, 2147483648
    %v645 = vor.u32 1.1754944e-38, %v644
    %v646 = vsel %vm643, %v645, %v641
    %v647 = vmul.f32 1.0, %v646
    %v648 = vrcp.pop %v616
    %v649 = vmul.f32 %v616, %v648
    %v650 = vsub.f32 1.0, %v649
    %v651 = vmul.f32 %v648, %v650
    %v652 = vadd.f32 %v648, %v651
    %vm653 = vweird.f32 %v616
    %vm654 = vweird.f32 %v648
    %vm655 = vmor %vm653, %vm654
    %v656 = vsel %vm655, %v648, %v652
    %v657 = vand.u32 2147483647, %v616
    %vm658 = vcmp.eq.f32.partialorder %v657, 8.507059e+37
    %v659 = vand.u32 %v616, 2147483648
    %v660 = vor.u32 1.1754944e-38, %v659
    %v661 = vsel %vm658, %v660, %v656
    %v662 = vmul.f32 1.0, %v661
    %v663 = vrcp.pop %v617
    %v664 = vmul.f32 %v617, %v663
    %v665 = vsub.f32 1.0, %v664
    %v666 = vmul.f32 %v663, %v665
    %v667 = vadd.f32 %v663, %v666
    %vm668 = vweird.f32 %v617
    %vm669 = vweird.f32 %v663
    %vm670 = vmor %vm668, %vm669
    %v671 = vsel %vm670, %v663, %v667
    %v672 = vand.u32 2147483647, %v617
    %vm673 = vcmp.eq.f32.partialorder %v672, 8.507059e+37
    %v674 = vand.u32 %v617, 2147483648
    %v675 = vor.u32 1.1754944e-38, %v674
    %v676 = vsel %vm673, %v675, %v671
    %v677 = vmul.f32 1.0, %v676
    %v678 = vmul.f32 %v598, %v632
    %v679 = vmul.f32 %v599, %v647
    %v680 = vmul.f32 %v600, %v662
    %v681 = vmul.f32 %v601, %v677
    %s682 = scalar_lea.vmem [#allocation9], 96
    %683 = vst [vmem:[%s682] sm:$0xff] %v678
    %684 = vst [vmem:[%s682 + $0x8] sm:$0xff] %v679
    %685 = vst [vmem:[%s682 + $0x10] sm:$0xff] %v680
    %686 = vst [vmem:[%s682 + $0x18] sm:$0xff] %v681
    %s687 = sld [smem:[#allocation8 + $0x4]]
    %s688 = sld [smem:[#allocation7 + $0x200]]
    %v689 = vld [vmem:[#allocation2] sm:$0xff]
    %v690 = vld [vmem:[#allocation2 + $0x8] sm:$0xff]
    %v691 = vld [vmem:[#allocation2 + $0x10] sm:$0xff]
    %v692 = vld [vmem:[#allocation2 + $0x18] sm:$0xff]
    %v693 = vstv %s688
    %v694 = vmul.f32 %v693, %v689
    %v695 = vmul.f32 %v693, %v690
    %v696 = vmul.f32 %v693, %v691
    %v697 = vmul.f32 %v693, %v692
    %v698 = vstv %s687
    %v699 = vadd.f32 %v698, %v694
    %v700 = vadd.f32 %v698, %v695
    %v701 = vadd.f32 %v698, %v696
    %v702 = vadd.f32 %v698, %v697
    %s703 = sld [smem:[#allocation7 + $0x201]]
    %v704 = vld [vmem:[%s73] sm:$0xff]
    %v705 = vld [vmem:[%s73 + $0x8] sm:$0xff]
    %v706 = vld [vmem:[%s73 + $0x10] sm:$0xff]
    %v707 = vld [vmem:[%s73 + $0x18] sm:$0xff]
    %v708 = vstv %s703
    %v709 = vmul.f32 %v708, %v704
    %v710 = vmul.f32 %v708, %v705
    %v711 = vmul.f32 %v708, %v706
    %v712 = vmul.f32 %v708, %v707
    %v713 = vadd.f32 %v699, %v709
    %v714 = vadd.f32 %v700, %v710
    %v715 = vadd.f32 %v701, %v711
    %v716 = vadd.f32 %v702, %v712
    %s717 = sld [smem:[#allocation7 + $0x202]]
    %v718 = vld [vmem:[%s88] sm:$0xff]
    %v719 = vld [vmem:[%s88 + $0x8] sm:$0xff]
    %v720 = vld [vmem:[%s88 + $0x10] sm:$0xff]
    %v721 = vld [vmem:[%s88 + $0x18] sm:$0xff]
    %v722 = vstv %s717
    %v723 = vmul.f32 %v722, %v718
    %v724 = vmul.f32 %v722, %v719
    %v725 = vmul.f32 %v722, %v720
    %v726 = vmul.f32 %v722, %v721
    %v727 = vadd.f32 %v713, %v723
    %v728 = vadd.f32 %v714, %v724
    %v729 = vadd.f32 %v715, %v725
    %v730 = vadd.f32 %v716, %v726
    %s731 = sld [smem:[#allocation7 + $0x203]]
    %v732 = vld [vmem:[%s103] sm:$0xff]
    %v733 = vld [vmem:[%s103 + $0x8] sm:$0xff]
    %v734 = vld [vmem:[%s103 + $0x10] sm:$0xff]
    %v735 = vld [vmem:[%s103 + $0x18] sm:$0xff]
    %v736 = vstv %s731
    %v737 = vmul.f32 %v736, %v732
    %v738 = vmul.f32 %v736, %v733
    %v739 = vmul.f32 %v736, %v734
    %v740 = vmul.f32 %v736, %v735
    %v741 = vadd.f32 %v727, %v737
    %v742 = vadd.f32 %v728, %v738
    %v743 = vadd.f32 %v729, %v739
    %v744 = vadd.f32 %v730, %v740
    %s745 = sld [smem:[#allocation7 + $0x204]]
    %v746 = vld [vmem:[%s118] sm:$0xff]
    %v747 = vld [vmem:[%s118 + $0x8] sm:$0xff]
    %v748 = vld [vmem:[%s118 + $0x10] sm:$0xff]
    %v749 = vld [vmem:[%s118 + $0x18] sm:$0xff]
    %v750 = vstv %s745
    %v751 = vmul.f32 %v750, %v746
    %v752 = vmul.f32 %v750, %v747
    %v753 = vmul.f32 %v750, %v748
    %v754 = vmul.f32 %v750, %v749
    %v755 = vadd.f32 %v741, %v751
    %v756 = vadd.f32 %v742, %v752
    %v757 = vadd.f32 %v743, %v753
    %v758 = vadd.f32 %v744, %v754
    %v759 = vxor.u32 %v755, 2147483648
    %v760 = vxor.u32 %v756, 2147483648
    %v761 = vxor.u32 %v757, 2147483648
    %v762 = vxor.u32 %v758, 2147483648
    %v763 = vmul.f32 %v759, 1.442695
    %v764 = vpow.pop %v763
    %v765 = vmul.f32 %v760, 1.442695
    %v766 = vpow.pop %v765
    %v767 = vmul.f32 %v761, 1.442695
    %v768 = vpow.pop %v767
    %v769 = vmul.f32 %v762, 1.442695
    %v770 = vpow.pop %v769
    %v771 = vadd.f32 %v764, 1.0
    %v772 = vadd.f32 %v766, 1.0
    %v773 = vadd.f32 %v768, 1.0
    %v774 = vadd.f32 %v770, 1.0
    %v775 = vrcp.pop %v771
    %v776 = vmul.f32 %v771, %v775
    %v777 = vsub.f32 1.0, %v776
    %v778 = vmul.f32 %v775, %v777
    %v779 = vadd.f32 %v775, %v778
    %vm780 = vweird.f32 %v771
    %vm781 = vweird.f32 %v775
    %vm782 = vmor %vm780, %vm781
    %v783 = vsel %vm782, %v775, %v779
    %v784 = vand.u32 2147483647, %v771
    %vm785 = vcmp.eq.f32.partialorder %v784, 8.507059e+37
    %v786 = vand.u32 %v771, 2147483648
    %v787 = vor.u32 1.1754944e-38, %v786
    %v788 = vsel %vm785, %v787, %v783
    %v789 = vmul.f32 1.0, %v788
    %v790 = vrcp.pop %v772
    %v791 = vmul.f32 %v772, %v790
    %v792 = vsub.f32 1.0, %v791
    %v793 = vmul.f32 %v790, %v792
    %v794 = vadd.f32 %v790, %v793
    %vm795 = vweird.f32 %v772
    %vm796 = vweird.f32 %v790
    %vm797 = vmor %vm795, %vm796
    %v798 = vsel %vm797, %v790, %v794
    %v799 = vand.u32 2147483647, %v772
    %vm800 = vcmp.eq.f32.partialorder %v799, 8.507059e+37
    %v801 = vand.u32 %v772, 2147483648
    %v802 = vor.u32 1.1754944e-38, %v801
    %v803 = vsel %vm800, %v802, %v798
    %v804 = vmul.f32 1.0, %v803
    %v805 = vrcp.pop %v773
    %v806 = vmul.f32 %v773, %v805
    %v807 = vsub.f32 1.0, %v806
    %v808 = vmul.f32 %v805, %v807
    %v809 = vadd.f32 %v805, %v808
    %vm810 = vweird.f32 %v773
    %vm811 = vweird.f32 %v805
    %vm812 = vmor %vm810, %vm811
    %v813 = vsel %vm812, %v805, %v809
    %v814 = vand.u32 2147483647, %v773
    %vm815 = vcmp.eq.f32.partialorder %v814, 8.507059e+37
    %v816 = vand.u32 %v773, 2147483648
    %v817 = vor.u32 1.1754944e-38, %v816
    %v818 = vsel %vm815, %v817, %v813
    %v819 = vmul.f32 1.0, %v818
    %v820 = vrcp.pop %v774
    %v821 = vmul.f32 %v774, %v820
    %v822 = vsub.f32 1.0, %v821
    %v823 = vmul.f32 %v820, %v822
    %v824 = vadd.f32 %v820, %v823
    %vm825 = vweird.f32 %v774
    %vm826 = vweird.f32 %v820
    %vm827 = vmor %vm825, %vm826
    %v828 = vsel %vm827, %v820, %v824
    %v829 = vand.u32 2147483647, %v774
    %vm830 = vcmp.eq.f32.partialorder %v829, 8.507059e+37
    %v831 = vand.u32 %v774, 2147483648
    %v832 = vor.u32 1.1754944e-38, %v831
    %v833 = vsel %vm830, %v832, %v828
    %v834 = vmul.f32 1.0, %v833
    %v835 = vmul.f32 %v755, %v789
    %v836 = vmul.f32 %v756, %v804
    %v837 = vmul.f32 %v757, %v819
    %v838 = vmul.f32 %v758, %v834
    %s839 = scalar_lea.vmem [#allocation9], 128
    %840 = vst [vmem:[%s839] sm:$0xff] %v835
    %841 = vst [vmem:[%s839 + $0x8] sm:$0xff] %v836
    %842 = vst [vmem:[%s839 + $0x10] sm:$0xff] %v837
    %843 = vst [vmem:[%s839 + $0x18] sm:$0xff] %v838
    %s844 = sld [smem:[#allocation8 + $0x5]]
    %s845 = sld [smem:[#allocation7 + $0x280]]
    %v846 = vld [vmem:[#allocation2] sm:$0xff]
    %v847 = vld [vmem:[#allocation2 + $0x8] sm:$0xff]
    %v848 = vld [vmem:[#allocation2 + $0x10] sm:$0xff]
    %v849 = vld [vmem:[#allocation2 + $0x18] sm:$0xff]
    %v850 = vstv %s845
    %v851 = vmul.f32 %v850, %v846
    %v852 = vmul.f32 %v850, %v847
    %v853 = vmul.f32 %v850, %v848
    %v854 = vmul.f32 %v850, %v849
    %v855 = vstv %s844
    %v856 = vadd.f32 %v855, %v851
    %v857 = vadd.f32 %v855, %v852
    %v858 = vadd.f32 %v855, %v853
    %v859 = vadd.f32 %v855, %v854
    %s860 = sld [smem:[#allocation7 + $0x281]]
    %v861 = vld [vmem:[%s73] sm:$0xff]
    %v862 = vld [vmem:[%s73 + $0x8] sm:$0xff]
    %v863 = vld [vmem:[%s73 + $0x10] sm:$0xff]
    %v864 = vld [vmem:[%s73 + $0x18] sm:$0xff]
    %v865 = vstv %s860
    %v866 = vmul.f32 %v865, %v861
    %v867 = vmul.f32 %v865, %v862
    %v868 = vmul.f32 %v865, %v863
    %v869 = vmul.f32 %v865, %v864
    %v870 = vadd.f32 %v856, %v866
    %v871 = vadd.f32 %v857, %v867
    %v872 = vadd.f32 %v858, %v868
    %v873 = vadd.f32 %v859, %v869
    %s874 = sld [smem:[#allocation7 + $0x282]]
    %v875 = vld [vmem:[%s88] sm:$0xff]
    %v876 = vld [vmem:[%s88 + $0x8] sm:$0xff]
    %v877 = vld [vmem:[%s88 + $0x10] sm:$0xff]
    %v878 = vld [vmem:[%s88 + $0x18] sm:$0xff]
    %v879 = vstv %s874
    %v880 = vmul.f32 %v879, %v875
    %v881 = vmul.f32 %v879, %v876
    %v882 = vmul.f32 %v879, %v877
    %v883 = vmul.f32 %v879, %v878
    %v884 = vadd.f32 %v870, %v880
    %v885 = vadd.f32 %v871, %v881
    %v886 = vadd.f32 %v872, %v882
    %v887 = vadd.f32 %v873, %v883
    %s888 = sld [smem:[#allocation7 + $0x283]]
    %v889 = vld [vmem:[%s103] sm:$0xff]
    %v890 = vld [vmem:[%s103 + $0x8] sm:$0xff]
    %v891 = vld [vmem:[%s103 + $0x10] sm:$0xff]
    %v892 = vld [vmem:[%s103 + $0x18] sm:$0xff]
    %v893 = vstv %s888
    %v894 = vmul.f32 %v893, %v889
    %v895 = vmul.f32 %v893, %v890
    %v896 = vmul.f32 %v893, %v891
    %v897 = vmul.f32 %v893, %v892
    %v898 = vadd.f32 %v884, %v894
    %v899 = vadd.f32 %v885, %v895
    %v900 = vadd.f32 %v886, %v896
    %v901 = vadd.f32 %v887, %v897
    %s902 = sld [smem:[#allocation7 + $0x284]]
    %v903 = vld [vmem:[%s118] sm:$0xff]
    %v904 = vld [vmem:[%s118 + $0x8] sm:$0xff]
    %v905 = vld [vmem:[%s118 + $0x10] sm:$0xff]
    %v906 = vld [vmem:[%s118 + $0x18] sm:$0xff]
    %v907 = vstv %s902
    %v908 = vmul.f32 %v907, %v903
    %v909 = vmul.f32 %v907, %v904
    %v910 = vmul.f32 %v907, %v905
    %v911 = vmul.f32 %v907, %v906
    %v912 = vadd.f32 %v898, %v908
    %v913 = vadd.f32 %v899, %v909
    %v914 = vadd.f32 %v900, %v910
    %v915 = vadd.f32 %v901, %v911
    %v916 = vxor.u32 %v912, 2147483648
    %v917 = vxor.u32 %v913, 2147483648
    %v918 = vxor.u32 %v914, 2147483648
    %v919 = vxor.u32 %v915, 2147483648
    %v920 = vmul.f32 %v916, 1.442695
    %v921 = vpow.pop %v920
    %v922 = vmul.f32 %v917, 1.442695
    %v923 = vpow.pop %v922
    %v924 = vmul.f32 %v918, 1.442695
    %v925 = vpow.pop %v924
    %v926 = vmul.f32 %v919, 1.442695
    %v927 = vpow.pop %v926
    %v928 = vadd.f32 %v921, 1.0
    %v929 = vadd.f32 %v923, 1.0
    %v930 = vadd.f32 %v925, 1.0
    %v931 = vadd.f32 %v927, 1.0
    %v932 = vrcp.pop %v928
    %v933 = vmul.f32 %v928, %v932
    %v934 = vsub.f32 1.0, %v933
    %v935 = vmul.f32 %v932, %v934
    %v936 = vadd.f32 %v932, %v935
    %vm937 = vweird.f32 %v928
    %vm938 = vweird.f32 %v932
    %vm939 = vmor %vm937, %vm938
    %v940 = vsel %vm939, %v932, %v936
    %v941 = vand.u32 2147483647, %v928
    %vm942 = vcmp.eq.f32.partialorder %v941, 8.507059e+37
    %v943 = vand.u32 %v928, 2147483648
    %v944 = vor.u32 1.1754944e-38, %v943
    %v945 = vsel %vm942, %v944, %v940
    %v946 = vmul.f32 1.0, %v945
    %v947 = vrcp.pop %v929
    %v948 = vmul.f32 %v929, %v947
    %v949 = vsub.f32 1.0, %v948
    %v950 = vmul.f32 %v947, %v949
    %v951 = vadd.f32 %v947, %v950
    %vm952 = vweird.f32 %v929
    %vm953 = vweird.f32 %v947
    %vm954 = vmor %vm952, %vm953
    %v955 = vsel %vm954, %v947, %v951
    %v956 = vand.u32 2147483647, %v929
    %vm957 = vcmp.eq.f32.partialorder %v956, 8.507059e+37
    %v958 = vand.u32 %v929, 2147483648
    %v959 = vor.u32 1.1754944e-38, %v958
    %v960 = vsel %vm957, %v959, %v955
    %v961 = vmul.f32 1.0, %v960
    %v962 = vrcp.pop %v930
    %v963 = vmul.f32 %v930, %v962
    %v964 = vsub.f32 1.0, %v963
    %v965 = vmul.f32 %v962, %v964
    %v966 = vadd.f32 %v962, %v965
    %vm967 = vweird.f32 %v930
    %vm968 = vweird.f32 %v962
    %vm969 = vmor %vm967, %vm968
    %v970 = vsel %vm969, %v962, %v966
    %v971 = vand.u32 2147483647, %v930
    %vm972 = vcmp.eq.f32.partialorder %v971, 8.507059e+37
    %v973 = vand.u32 %v930, 2147483648
    %v974 = vor.u32 1.1754944e-38, %v973
    %v975 = vsel %vm972, %v974, %v970
    %v976 = vmul.f32 1.0, %v975
    %v977 = vrcp.pop %v931
    %v978 = vmul.f32 %v931, %v977
    %v979 = vsub.f32 1.0, %v978
    %v980 = vmul.f32 %v977, %v979
    %v981 = vadd.f32 %v977, %v980
    %vm982 = vweird.f32 %v931
    %vm983 = vweird.f32 %v977
    %vm984 = vmor %vm982, %vm983
    %v985 = vsel %vm984, %v977, %v981
    %v986 = vand.u32 2147483647, %v931
    %vm987 = vcmp.eq.f32.partialorder %v986, 8.507059e+37
    %v988 = vand.u32 %v931, 2147483648
    %v989 = vor.u32 1.1754944e-38, %v988
    %v990 = vsel %vm987, %v989, %v985
    %v991 = vmul.f32 1.0, %v990
    %v992 = vmul.f32 %v912, %v946
    %v993 = vmul.f32 %v913, %v961
    %v994 = vmul.f32 %v914, %v976
    %v995 = vmul.f32 %v915, %v991
    %s996 = scalar_lea.vmem [#allocation9], 160
    %997 = vst [vmem:[%s996] sm:$0xff] %v992
    %998 = vst [vmem:[%s996 + $0x8] sm:$0xff] %v993
    %999 = vst [vmem:[%s996 + $0x10] sm:$0xff] %v994
    %1000 = vst [vmem:[%s996 + $0x18] sm:$0xff] %v995
    %s1001 = sld [smem:[#allocation8 + $0x6]]
    %s1002 = sld [smem:[#allocation7 + $0x300]]
    %v1003 = vld [vmem:[#allocation2] sm:$0xff]
    %v1004 = vld [vmem:[#allocation2 + $0x8] sm:$0xff]
    %v1005 = vld [vmem:[#allocation2 + $0x10] sm:$0xff]
    %v1006 = vld [vmem:[#allocation2 + $0x18] sm:$0xff]
    %v1007 = vstv %s1002
    %v1008 = vmul.f32 %v1007, %v1003
    %v1009 = vmul.f32 %v1007, %v1004
    %v1010 = vmul.f32 %v1007, %v1005
    %v1011 = vmul.f32 %v1007, %v1006
    %v1012 = vstv %s1001
    %v1013 = vadd.f32 %v1012, %v1008
    %v1014 = vadd.f32 %v1012, %v1009
    %v1015 = vadd.f32 %v1012, %v1010
    %v1016 = vadd.f32 %v1012, %v1011
    %s1017 = sld [smem:[#allocation7 + $0x301]]
    %v1018 = vld [vmem:[%s73] sm:$0xff]
    %v1019 = vld [vmem:[%s73 + $0x8] sm:$0xff]
    %v1020 = vld [vmem:[%s73 + $0x10] sm:$0xff]
    %v1021 = vld [vmem:[%s73 + $0x18] sm:$0xff]
    %v1022 = vstv %s1017
    %v1023 = vmul.f32 %v1022, %v1018
    %v1024 = vmul.f32 %v1022, %v1019
    %v1025 = vmul.f32 %v1022, %v1020
    %v1026 = vmul.f32 %v1022, %v1021
    %v1027 = vadd.f32 %v1013, %v1023
    %v1028 = vadd.f32 %v1014, %v1024
    %v1029 = vadd.f32 %v1015, %v1025
    %v1030 = vadd.f32 %v1016, %v1026
    %s1031 = sld [smem:[#allocation7 + $0x302]]
    %v1032 = vld [vmem:[%s88] sm:$0xff]
    %v1033 = vld [vmem:[%s88 + $0x8] sm:$0xff]
    %v1034 = vld [vmem:[%s88 + $0x10] sm:$0xff]
    %v1035 = vld [vmem:[%s88 + $0x18] sm:$0xff]
    %v1036 = vstv %s1031
    %v1037 = vmul.f32 %v1036, %v1032
    %v1038 = vmul.f32 %v1036, %v1033
    %v1039 = vmul.f32 %v1036, %v1034
    %v1040 = vmul.f32 %v1036, %v1035
    %v1041 = vadd.f32 %v1027, %v1037
    %v1042 = vadd.f32 %v1028, %v1038
    %v1043 = vadd.f32 %v1029, %v1039
    %v1044 = vadd.f32 %v1030, %v1040
    %s1045 = sld [smem:[#allocation7 + $0x303]]
    %v1046 = vld [vmem:[%s103] sm:$0xff]
    %v1047 = vld [vmem:[%s103 + $0x8] sm:$0xff]
    %v1048 = vld [vmem:[%s103 + $0x10] sm:$0xff]
    %v1049 = vld [vmem:[%s103 + $0x18] sm:$0xff]
    %v1050 = vstv %s1045
    %v1051 = vmul.f32 %v1050, %v1046
    %v1052 = vmul.f32 %v1050, %v1047
    %v1053 = vmul.f32 %v1050, %v1048
    %v1054 = vmul.f32 %v1050, %v1049
    %v1055 = vadd.f32 %v1041, %v1051
    %v1056 = vadd.f32 %v1042, %v1052
    %v1057 = vadd.f32 %v1043, %v1053
    %v1058 = vadd.f32 %v1044, %v1054
    %s1059 = sld [smem:[#allocation7 + $0x304]]
    %v1060 = vld [vmem:[%s118] sm:$0xff]
    %v1061 = vld [vmem:[%s118 + $0x8] sm:$0xff]
    %v1062 = vld [vmem:[%s118 + $0x10] sm:$0xff]
    %v1063 = vld [vmem:[%s118 + $0x18] sm:$0xff]
    %v1064 = vstv %s1059
    %v1065 = vmul.f32 %v1064, %v1060
    %v1066 = vmul.f32 %v1064, %v1061
    %v1067 = vmul.f32 %v1064, %v1062
    %v1068 = vmul.f32 %v1064, %v1063
    %v1069 = vadd.f32 %v1055, %v1065
    %v1070 = vadd.f32 %v1056, %v1066
    %v1071 = vadd.f32 %v1057, %v1067
    %v1072 = vadd.f32 %v1058, %v1068
    %v1073 = vxor.u32 %v1069, 2147483648
    %v1074 = vxor.u32 %v1070, 2147483648
    %v1075 = vxor.u32 %v1071, 2147483648
    %v1076 = vxor.u32 %v1072, 2147483648
    %v1077 = vmul.f32 %v1073, 1.442695
    %v1078 = vpow.pop %v1077
    %v1079 = vmul.f32 %v1074, 1.442695
    %v1080 = vpow.pop %v1079
    %v1081 = vmul.f32 %v1075, 1.442695
    %v1082 = vpow.pop %v1081
    %v1083 = vmul.f32 %v1076, 1.442695
    %v1084 = vpow.pop %v1083
    %v1085 = vadd.f32 %v1078, 1.0
    %v1086 = vadd.f32 %v1080, 1.0
    %v1087 = vadd.f32 %v1082, 1.0
    %v1088 = vadd.f32 %v1084, 1.0
    %v1089 = vrcp.pop %v1085
    %v1090 = vmul.f32 %v1085, %v1089
    %v1091 = vsub.f32 1.0, %v1090
    %v1092 = vmul.f32 %v1089, %v1091
    %v1093 = vadd.f32 %v1089, %v1092
    %vm1094 = vweird.f32 %v1085
    %vm1095 = vweird.f32 %v1089
    %vm1096 = vmor %vm1094, %vm1095
    %v1097 = vsel %vm1096, %v1089, %v1093
    %v1098 = vand.u32 2147483647, %v1085
    %vm1099 = vcmp.eq.f32.partialorder %v1098, 8.507059e+37
    %v1100 = vand.u32 %v1085, 2147483648
    %v1101 = vor.u32 1.1754944e-38, %v1100
    %v1102 = vsel %vm1099, %v1101, %v1097
    %v1103 = vmul.f32 1.0, %v1102
    %v1104 = vrcp.pop %v1086
    %v1105 = vmul.f32 %v1086, %v1104
    %v1106 = vsub.f32 1.0, %v1105
    %v1107 = vmul.f32 %v1104, %v1106
    %v1108 = vadd.f32 %v1104, %v1107
    %vm1109 = vweird.f32 %v1086
    %vm1110 = vweird.f32 %v1104
    %vm1111 = vmor %vm1109, %vm1110
    %v1112 = vsel %vm1111, %v1104, %v1108
    %v1113 = vand.u32 2147483647, %v1086
    %vm1114 = vcmp.eq.f32.partialorder %v1113, 8.507059e+37
    %v1115 = vand.u32 %v1086, 2147483648
    %v1116 = vor.u32 1.1754944e-38, %v1115
    %v1117 = vsel %vm1114, %v1116, %v1112
    %v1118 = vmul.f32 1.0, %v1117
    %v1119 = vrcp.pop %v1087
    %v1120 = vmul.f32 %v1087, %v1119
    %v1121 = vsub.f32 1.0, %v1120
    %v1122 = vmul.f32 %v1119, %v1121
    %v1123 = vadd.f32 %v1119, %v1122
    %vm1124 = vweird.f32 %v1087
    %vm1125 = vweird.f32 %v1119
    %vm1126 = vmor %vm1124, %vm1125
    %v1127 = vsel %vm1126, %v1119, %v1123
    %v1128 = vand.u32 2147483647, %v1087
    %vm1129 = vcmp.eq.f32.partialorder %v1128, 8.507059e+37
    %v1130 = vand.u32 %v1087, 2147483648
    %v1131 = vor.u32 1.1754944e-38, %v1130
    %v1132 = vsel %vm1129, %v1131, %v1127
    %v1133 = vmul.f32 1.0, %v1132
    %v1134 = vrcp.pop %v1088
    %v1135 = vmul.f32 %v1088, %v1134
    %v1136 = vsub.f32 1.0, %v1135
    %v1137 = vmul.f32 %v1134, %v1136
    %v1138 = vadd.f32 %v1134, %v1137
    %vm1139 = vweird.f32 %v1088
    %vm1140 = vweird.f32 %v1134
    %vm1141 = vmor %vm1139, %vm1140
    %v1142 = vsel %vm1141, %v1134, %v1138
    %v1143 = vand.u32 2147483647, %v1088
    %vm1144 = vcmp.eq.f32.partialorder %v1143, 8.507059e+37
    %v1145 = vand.u32 %v1088, 2147483648
    %v1146 = vor.u32 1.1754944e-38, %v1145
    %v1147 = vsel %vm1144, %v1146, %v1142
    %v1148 = vmul.f32 1.0, %v1147
    %v1149 = vmul.f32 %v1069, %v1103
    %v1150 = vmul.f32 %v1070, %v1118
    %v1151 = vmul.f32 %v1071, %v1133
    %v1152 = vmul.f32 %v1072, %v1148
    %s1153 = scalar_lea.vmem [#allocation9], 192
    %1154 = vst [vmem:[%s1153] sm:$0xff] %v1149
    %1155 = vst [vmem:[%s1153 + $0x8] sm:$0xff] %v1150
    %1156 = vst [vmem:[%s1153 + $0x10] sm:$0xff] %v1151
    %1157 = vst [vmem:[%s1153 + $0x18] sm:$0xff] %v1152
    %s1158 = sld [smem:[#allocation8 + $0x7]]
    %s1159 = sld [smem:[#allocation7 + $0x380]]
    %v1160 = vld [vmem:[#allocation2] sm:$0xff]
    %v1161 = vld [vmem:[#allocation2 + $0x8] sm:$0xff]
    %v1162 = vld [vmem:[#allocation2 + $0x10] sm:$0xff]
    %v1163 = vld [vmem:[#allocation2 + $0x18] sm:$0xff]
    %v1164 = vstv %s1159
    %v1165 = vmul.f32 %v1164, %v1160
    %v1166 = vmul.f32 %v1164, %v1161
    %v1167 = vmul.f32 %v1164, %v1162
    %v1168 = vmul.f32 %v1164, %v1163
    %v1169 = vstv %s1158
    %v1170 = vadd.f32 %v1169, %v1165
    %v1171 = vadd.f32 %v1169, %v1166
    %v1172 = vadd.f32 %v1169, %v1167
    %v1173 = vadd.f32 %v1169, %v1168
    %s1174 = sld [smem:[#allocation7 + $0x381]]
    %v1175 = vld [vmem:[%s73] sm:$0xff]
    %v1176 = vld [vmem:[%s73 + $0x8] sm:$0xff]
    %v1177 = vld [vmem:[%s73 + $0x10] sm:$0xff]
    %v1178 = vld [vmem:[%s73 + $0x18] sm:$0xff]
    %v1179 = vstv %s1174
    %v1180 = vmul.f32 %v1179, %v1175
    %v1181 = vmul.f32 %v1179, %v1176
    %v1182 = vmul.f32 %v1179, %v1177
    %v1183 = vmul.f32 %v1179, %v1178
    %v1184 = vadd.f32 %v1170, %v1180
    %v1185 = vadd.f32 %v1171, %v1181
    %v1186 = vadd.f32 %v1172, %v1182
    %v1187 = vadd.f32 %v1173, %v1183
    %s1188 = sld [smem:[#allocation7 + $0x382]]
    %v1189 = vld [vmem:[%s88] sm:$0xff]
    %v1190 = vld [vmem:[%s88 + $0x8] sm:$0xff]
    %v1191 = vld [vmem:[%s88 + $0x10] sm:$0xff]
    %v1192 = vld [vmem:[%s88 + $0x18] sm:$0xff]
    %v1193 = vstv %s1188
    %v1194 = vmul.f32 %v1193, %v1189
    %v1195 = vmul.f32 %v1193, %v1190
    %v1196 = vmul.f32 %v1193, %v1191
    %v1197 = vmul.f32 %v1193, %v1192
    %v1198 = vadd.f32 %v1184, %v1194
    %v1199 = vadd.f32 %v1185, %v1195
    %v1200 = vadd.f32 %v1186, %v1196
    %v1201 = vadd.f32 %v1187, %v1197
    %s1202 = sld [smem:[#allocation7 + $0x383]]
    %v1203 = vld [vmem:[%s103] sm:$0xff]
    %v1204 = vld [vmem:[%s103 + $0x8] sm:$0xff]
    %v1205 = vld [vmem:[%s103 + $0x10] sm:$0xff]
    %v1206 = vld [vmem:[%s103 + $0x18] sm:$0xff]
    %v1207 = vstv %s1202
    %v1208 = vmul.f32 %v1207, %v1203
    %v1209 = vmul.f32 %v1207, %v1204
    %v1210 = vmul.f32 %v1207, %v1205
    %v1211 = vmul.f32 %v1207, %v1206
    %v1212 = vadd.f32 %v1198, %v1208
    %v1213 = vadd.f32 %v1199, %v1209
    %v1214 = vadd.f32 %v1200, %v1210
    %v1215 = vadd.f32 %v1201, %v1211
    %s1216 = sld [smem:[#allocation7 + $0x384]]
    %v1217 = vld [vmem:[%s118] sm:$0xff]
    %v1218 = vld [vmem:[%s118 + $0x8] sm:$0xff]
    %v1219 = vld [vmem:[%s118 + $0x10] sm:$0xff]
    %v1220 = vld [vmem:[%s118 + $0x18] sm:$0xff]
    %v1221 = vstv %s1216
    %v1222 = vmul.f32 %v1221, %v1217
    %v1223 = vmul.f32 %v1221, %v1218
    %v1224 = vmul.f32 %v1221, %v1219
    %v1225 = vmul.f32 %v1221, %v1220
    %v1226 = vadd.f32 %v1212, %v1222
    %v1227 = vadd.f32 %v1213, %v1223
    %v1228 = vadd.f32 %v1214, %v1224
    %v1229 = vadd.f32 %v1215, %v1225
    %v1230 = vxor.u32 %v1226, 2147483648
    %v1231 = vxor.u32 %v1227, 2147483648
    %v1232 = vxor.u32 %v1228, 2147483648
    %v1233 = vxor.u32 %v1229, 2147483648
    %v1234 = vmul.f32 %v1230, 1.442695
    %v1235 = vpow.pop %v1234
    %v1236 = vmul.f32 %v1231, 1.442695
    %v1237 = vpow.pop %v1236
    %v1238 = vmul.f32 %v1232, 1.442695
    %v1239 = vpow.pop %v1238
    %v1240 = vmul.f32 %v1233, 1.442695
    %v1241 = vpow.pop %v1240
    %v1242 = vadd.f32 %v1235, 1.0
    %v1243 = vadd.f32 %v1237, 1.0
    %v1244 = vadd.f32 %v1239, 1.0
    %v1245 = vadd.f32 %v1241, 1.0
    %v1246 = vrcp.pop %v1242
    %v1247 = vmul.f32 %v1242, %v1246
    %v1248 = vsub.f32 1.0, %v1247
    %v1249 = vmul.f32 %v1246, %v1248
    %v1250 = vadd.f32 %v1246, %v1249
    %vm1251 = vweird.f32 %v1242
    %vm1252 = vweird.f32 %v1246
    %vm1253 = vmor %vm1251, %vm1252
    %v1254 = vsel %vm1253, %v1246, %v1250
    %v1255 = vand.u32 2147483647, %v1242
    %vm1256 = vcmp.eq.f32.partialorder %v1255, 8.507059e+37
    %v1257 = vand.u32 %v1242, 2147483648
    %v1258 = vor.u32 1.1754944e-38, %v1257
    %v1259 = vsel %vm1256, %v1258, %v1254
    %v1260 = vmul.f32 1.0, %v1259
    %v1261 = vrcp.pop %v1243
    %v1262 = vmul.f32 %v1243, %v1261
    %v1263 = vsub.f32 1.0, %v1262
    %v1264 = vmul.f32 %v1261, %v1263
    %v1265 = vadd.f32 %v1261, %v1264
    %vm1266 = vweird.f32 %v1243
    %vm1267 = vweird.f32 %v1261
    %vm1268 = vmor %vm1266, %vm1267
    %v1269 = vsel %vm1268, %v1261, %v1265
    %v1270 = vand.u32 2147483647, %v1243
    %vm1271 = vcmp.eq.f32.partialorder %v1270, 8.507059e+37
    %v1272 = vand.u32 %v1243, 2147483648
    %v1273 = vor.u32 1.1754944e-38, %v1272
    %v1274 = vsel %vm1271, %v1273, %v1269
    %v1275 = vmul.f32 1.0, %v1274
    %v1276 = vrcp.pop %v1244
    %v1277 = vmul.f32 %v1244, %v1276
    %v1278 = vsub.f32 1.0, %v1277
    %v1279 = vmul.f32 %v1276, %v1278
    %v1280 = vadd.f32 %v1276, %v1279
    %vm1281 = vweird.f32 %v1244
    %vm1282 = vweird.f32 %v1276
    %vm1283 = vmor %vm1281, %vm1282
    %v1284 = vsel %vm1283, %v1276, %v1280
    %v1285 = vand.u32 2147483647, %v1244
    %vm1286 = vcmp.eq.f32.partialorder %v1285, 8.507059e+37
    %v1287 = vand.u32 %v1244, 2147483648
    %v1288 = vor.u32 1.1754944e-38, %v1287
    %v1289 = vsel %vm1286, %v1288, %v1284
    %v1290 = vmul.f32 1.0, %v1289
    %v1291 = vrcp.pop %v1245
    %v1292 = vmul.f32 %v1245, %v1291
    %v1293 = vsub.f32 1.0, %v1292
    %v1294 = vmul.f32 %v1291, %v1293
    %v1295 = vadd.f32 %v1291, %v1294
    %vm1296 = vweird.f32 %v1245
    %vm1297 = vweird.f32 %v1291
    %vm1298 = vmor %vm1296, %vm1297
    %v1299 = vsel %vm1298, %v1291, %v1295
    %v1300 = vand.u32 2147483647, %v1245
    %vm1301 = vcmp.eq.f32.partialorder %v1300, 8.507059e+37
    %v1302 = vand.u32 %v1245, 2147483648
    %v1303 = vor.u32 1.1754944e-38, %v1302
    %v1304 = vsel %vm1301, %v1303, %v1299
    %v1305 = vmul.f32 1.0, %v1304
    %v1306 = vmul.f32 %v1226, %v1260
    %v1307 = vmul.f32 %v1227, %v1275
    %v1308 = vmul.f32 %v1228, %v1290
    %v1309 = vmul.f32 %v1229, %v1305
    %s1310 = scalar_lea.vmem [#allocation9], 224
    %1311 = vst [vmem:[%s1310] sm:$0xff] %v1306
    %1312 = vst [vmem:[%s1310 + $0x8] sm:$0xff] %v1307
    %1313 = vst [vmem:[%s1310 + $0x10] sm:$0xff] %v1308
    %1314 = vst [vmem:[%s1310 + $0x18] sm:$0xff] %v1309
    // Predicated region
    $region26: #{tpu_custom_call.1} parent=1 // pred_check
      _
    $region27: #{tpu_custom_call.1} parent=1 // pred_check_branch
      %1316 = sbr.rel (0) target = $region29
    $region28: #{tpu_custom_call.1} parent=1 // pred_region
      %1318 = vsyncadd [#allocation4], 0
      %s1319 = sshll.u32 [#allocation9], 4
      %s1320 = int_to_ptr.vmem [resolvable:$true] %s1319
      %s1321 = sshll.u32 %s3, 4
      %s1322 = int_to_ptr.hbm [resolvable:$true] %s1321
      %1327 = dma.vmem_to_hbm [thread:$0]  %s1320, 4096, %s1322, [#allocation4], 128, 128, 8
    $region29: #{tpu_custom_call.1} parent=1 // pred_fallthru
      _
    // Predicated region
    $region30: #{tpu_custom_call.1} parent=1 // pred_check
      _
    $region31: #{tpu_custom_call.1} parent=1 // pred_check_branch
      %1329 = sbr.rel (0) target = $region33
    $region32: #{tpu_custom_call.1} parent=1 // pred_region
      %1331 = dma.done [#allocation4], 4096
    $region33: #{tpu_custom_call.1} parent=1 // pred_fallthru
      _
    %1332 = vsyncpa [#allocation3], 1
    %1333 = vsyncpa [#allocation4], 1
    %1334 = vsyncpa [#allocation5], 1
    %1335 = vsyncpa [#allocation6], 1

</llo_original>
